<compile_context>
chip_gen: v5e
topology: v5e:2x2
jax: 0.10.0
libtpu: 0.0.40
codegen_flags: <defaults>
</compile_context>

<pallas_src>
import functools

import jax
import jax.numpy as jnp
from jax import lax
from jax.experimental import pallas as pl
from jax.experimental.pallas import tpu as pltpu


def _gru_chunk_kernel(gx_r_ref, gx_z_ref, gx_n_ref,
                      whh_r_ref, whh_z_ref, whh_n_ref,
                      bhh_n_ref, wlin_ref, const_ref,
                      out_ref, h_ref, hs_ref, *, t_chunk, unroll):
    """Run T_CHUNK GRU steps for one (batch-tile, time-chunk) grid cell."""
    chunk = pl.program_id(1)

    @pl.when(chunk == 0)
    def _():
        h_ref[...] = jnp.zeros_like(h_ref)

    b_tile, H = h_ref.shape

    # Hoisted out of the serial loop: weights stay resident, bias broadcast once.
    whh_r = whh_r_ref[...]                                   # (H, H)
    whh_z = whh_z_ref[...]
    whh_n = whh_n_ref[...]
    bhh_n = jnp.broadcast_to(bhh_n_ref[...], (b_tile, H))    # (B_TILE, H)

    def step(t, h):
        gh_r = jnp.dot(h, whh_r, preferred_element_type=jnp.float32)
        gh_z = jnp.dot(h, whh_z, preferred_element_type=jnp.float32)
        gh_n = jnp.dot(h, whh_n, preferred_element_type=jnp.float32)
        r = jax.nn.sigmoid(gx_r_ref[t] + gh_r)
        z = jax.nn.sigmoid(gx_z_ref[t] + gh_z)
        n = jnp.tanh(gx_n_ref[t] + r * (gh_n + bhh_n))
        h_new = (1.0 - z) * n + z * h
        hs_ref[t] = h_new            # stage hidden state for the chunk readout
        return h_new

    h_final = lax.fori_loop(0, t_chunk, step, h_ref[...], unroll=unroll)
    h_ref[...] = h_final             # carry hidden state to the next time chunk

    # Per-chunk readout: Linear(H, 1) + (b_lin + V_o), written lane-dense as a
    # (B_TILE, T_CHUNK) slab with time on the lane axis.
    w = wlin_ref[...]                                        # (1, H)
    y = jnp.sum(hs_ref[...] * w[jnp.newaxis, :, :], axis=-1)  # (T_CHUNK, B_TILE)
    out_ref[...] = y.T + const_ref[0, 0]


def block_gru_forward(S_e, S_i, params, t_chunk=None):
    """S_e: (B, T, E_no), S_i: (B, T, I_no)  ->  (B, T) float32."""
    B, T, E = S_e.shape
    I = S_i.shape[2]
    H = params["W_hh"].shape[1]
    f32 = jnp.float32

    S_e = S_e.astype(f32)
    S_i = S_i.astype(f32)

    # ---- fold the time-constant synaptic scales into the connectivity mats.
    ce_scaled = (params["C_syn_e"] * jnp.exp(params["E_scale"])[None, :]).T   # (E, sub)
    ci_scaled = -(params["C_syn_i"] * jnp.exp(params["I_scale"])[None, :]).T  # (I, sub)

    # ---- hoist all h-independent work out of the recurrence: one batched
    #      projection over every timestep, produced time-major and split per
    #      gate (PyTorch GRU gate order: r, z, n).  b_hh of r/z is affine in
    #      the pre-activation, so it is folded into gx as well.
    s_sub = (jnp.einsum("bte,es->tbs", S_e, ce_scaled)
             + jnp.einsum("bti,is->tbs", S_i, ci_scaled))      # (T, B, sub)

    W_ih, b_ih, b_hh = params["W_ih"], params["b_ih"], params["b_hh"]
    gate = lambda g: slice(g * H, (g + 1) * H)
    gx_r = jnp.einsum("tbs,gs->tbg", s_sub, W_ih[gate(0)]) + (b_ih[gate(0)] + b_hh[gate(0)])
    gx_z = jnp.einsum("tbs,gs->tbg", s_sub, W_ih[gate(1)]) + (b_ih[gate(1)] + b_hh[gate(1)])
    gx_n = jnp.einsum("tbs,gs->tbg", s_sub, W_ih[gate(2)]) + b_ih[gate(2)]

    whh_r = params["W_hh"][gate(0)].T                          # (H, H)
    whh_z = params["W_hh"][gate(1)].T
    whh_n = params["W_hh"][gate(2)].T
    bhh_n = b_hh[gate(2)].reshape(1, H)
    wlin = params["W_lin"].reshape(1, H)                       # (1, H)
    const = (params["b_lin"] + params["V_o"]).reshape(1, 1)    # b_lin + V_o

    # ---- time chunking: amortize per-grid-step pipeline overhead and keep
    #      the output block lane-dense (T_CHUNK a multiple of 128, or full T).
    if t_chunk is None:
        t_chunk = T
        for c in (512, 256, 128):
            if T % c == 0:
                t_chunk = c
                break
    assert T % t_chunk == 0, "T must be divisible by the time chunk"
    n_chunks = T // t_chunk
    unroll = min(t_chunk, 8)

    # ---- batch tiling: leading 'parallel' grid axis (second TensorCore on
    #      v7x); only split when the (8, 128) block alignment is preserved.
    b_tile = B // 2 if (B % 16 == 0) else B
    n_b = B // b_tile

    full = lambda shape: pl.BlockSpec(shape, lambda b, c: tuple(0 for _ in shape))

    out = pl.pallas_call(
        functools.partial(_gru_chunk_kernel, t_chunk=t_chunk, unroll=unroll),
        out_shape=jax.ShapeDtypeStruct((B, T), f32),
        grid_spec=pltpu.PrefetchScalarGridSpec(
            num_scalar_prefetch=0,
            grid=(n_b, n_chunks),
            in_specs=[
                pl.BlockSpec((t_chunk, b_tile, H), lambda b, c: (c, b, 0)),  # gx_r
                pl.BlockSpec((t_chunk, b_tile, H), lambda b, c: (c, b, 0)),  # gx_z
                pl.BlockSpec((t_chunk, b_tile, H), lambda b, c: (c, b, 0)),  # gx_n
                full((H, H)),          # W_hh_r^T
                full((H, H)),          # W_hh_z^T
                full((H, H)),          # W_hh_n^T
                full((1, H)),          # b_hh_n
                full((1, H)),          # W_lin
                full((1, 1)),          # b_lin + V_o
            ],
            out_specs=pl.BlockSpec((b_tile, t_chunk), lambda b, c: (b, c)),
            scratch_shapes=[
                pltpu.VMEM((b_tile, H), f32),             # carried hidden state
                pltpu.VMEM((t_chunk, b_tile, H), f32),    # chunk hidden states
            ],
        ),
        compiler_params=pltpu.CompilerParams(
            dimension_semantics=("parallel", "arbitrary")),   # serial over time
    )(gx_r, gx_z, gx_n, whh_r, whh_z, whh_n, bhh_n, wlin, const)

    return out


def ref_forward(S_e, S_i, p):
    """Pure-JAX reference (mirrors the PyTorch module exactly)."""
    H = p["W_hh"].shape[1]
    s_e = S_e * jnp.exp(p["E_scale"])[None, None, :]
    s_i = S_i * jnp.exp(p["I_scale"])[None, None, :] * -1.0
    s_sub = s_e @ p["C_syn_e"].T + s_i @ p["C_syn_i"].T          # (B, T, sub)

    def step(h, x):
        gx = x @ p["W_ih"].T + p["b_ih"]
        gh = h @ p["W_hh"].T + p["b_hh"]
        r = jax.nn.sigmoid(gx[:, :H] + gh[:, :H])
        z = jax.nn.sigmoid(gx[:, H:2 * H] + gh[:, H:2 * H])
        n = jnp.tanh(gx[:, 2 * H:] + r * gh[:, 2 * H:])
        h_new = (1.0 - z) * n + z * h
        return h_new, h_new

    h0 = jnp.zeros((S_e.shape[0], H), jnp.float32)
    _, hs = lax.scan(step, h0, jnp.transpose(s_sub, (1, 0, 2)))  # (T, B, H)
    lin = jnp.einsum("tbh,h->tb", hs, p["W_lin"][0]) + p["b_lin"][0]
    return jnp.transpose(lin, (1, 0)) + p["V_o"][0]


def make_params(key, sub_no, E_no, I_no, H_no):
    ks = jax.random.split(key, 10)
    unif = lambda k, shape, s: jax.random.uniform(
        k, shape, jnp.float32, minval=-s, maxval=s)
    s = 1.0 / jnp.sqrt(H_no)
    return {
        # connectivity matrices (module constructor args)
        "C_syn_e": (jax.random.uniform(ks[0], (sub_no, E_no)) > 0.5
                    ).astype(jnp.float32),
        "C_syn_i": (jax.random.uniform(ks[1], (sub_no, I_no)) > 0.5
                    ).astype(jnp.float32),
        # learnable params (deterministic synthetic init)
        "E_scale": 0.1 * jax.random.normal(ks[2], (E_no,), jnp.float32),
        "I_scale": 0.1 * jax.random.normal(ks[3], (I_no,), jnp.float32),
        "W_ih": unif(ks[4], (3 * H_no, sub_no), s),
        "W_hh": unif(ks[5], (3 * H_no, H_no), s),
        "b_ih": unif(ks[6], (3 * H_no,), s),
        "b_hh": unif(ks[7], (3 * H_no,), s),
        "W_lin": unif(ks[8], (1, H_no), s),
        "b_lin": unif(ks[9], (1,), s),
        "V_o": jnp.array([0.05], jnp.float32),
    }


def _run_case(key, B, T, E_no, I_no, sub_no, H_no, atol):
    k_se, k_si, k_p = jax.random.split(key, 3)
    S_e = jax.random.uniform(k_se, (B, T, E_no), jnp.float32)
    S_i = jax.random.uniform(k_si, (B, T, I_no), jnp.float32)
    params = make_params(k_p, sub_no, E_no, I_no, H_no)

    out = jax.block_until_ready(block_gru_forward(S_e, S_i, params))
    ref = jax.block_until_ready(ref_forward(S_e, S_i, params))

    assert out.shape == (B, T), out.shape
    if not jnp.allclose(out, ref, atol=atol, rtol=atol):
        raise AssertionError(
            f"mismatch (B={B}, T={T}): max err {jnp.max(jnp.abs(out - ref))}")


if __name__ == "__main__":
    key = jax.random.PRNGKey(0)
    k0, k1 = jax.random.split(key)

    # small module-consistent shapes: batch=2, seq=8, E=I=8, sub=4, hidden=32
    _run_case(k0, B=2, T=8, E_no=8, I_no=8, sub_no=4, H_no=32, atol=1e-4)
    # longer sequence exercising the chunked recurrence (T_CHUNK=128, 3 chunks)
    _run_case(k1, B=4, T=384, E_no=16, I_no=16, sub_no=8, H_no=64, atol=1e-3)

    print("KERNEL_OK")
</pallas_src>

<mosaic_0001>
module attributes {stable_mosaic.version = 11 : i64} {
  func.func @_gru_chunk_kernel(%arg0: i32, %arg1: i32, %arg2: memref<8x2x32xf32, #tpu.memory_space<vmem>>, %arg3: memref<8x2x32xf32, #tpu.memory_space<vmem>>, %arg4: memref<8x2x32xf32, #tpu.memory_space<vmem>>, %arg5: memref<32x32xf32, #tpu.memory_space<vmem>>, %arg6: memref<32x32xf32, #tpu.memory_space<vmem>>, %arg7: memref<32x32xf32, #tpu.memory_space<vmem>>, %arg8: memref<1x32xf32, #tpu.memory_space<vmem>>, %arg9: memref<1x32xf32, #tpu.memory_space<vmem>>, %arg10: memref<1x1xf32, #tpu.memory_space<vmem>>, %arg11: memref<2x8xf32, #tpu.memory_space<vmem>>, %arg12: memref<2x32xf32, #tpu.memory_space<vmem>>, %arg13: memref<8x2x32xf32, #tpu.memory_space<vmem>>) attributes {dimension_semantics = [#tpu.dimension_semantics<parallel>, #tpu.dimension_semantics<arbitrary>], iteration_bounds = array<i64: 1, 1>, scalar_prefetch = 0 : i64, scratch_operands = 2 : i64, tpu.core_type = #tpu.core_type<tc>, window_params = [{transform_indices = @transform_0, window_bounds = array<i64: 8, 2, 32>}, {transform_indices = @transform_1, window_bounds = array<i64: 8, 2, 32>}, {transform_indices = @transform_2, window_bounds = array<i64: 8, 2, 32>}, {pipeline_mode = #tpu.pipeline_mode<synchronous>, transform_indices = @transform_3, window_bounds = array<i64: 32, 32>}, {pipeline_mode = #tpu.pipeline_mode<synchronous>, transform_indices = @transform_4, window_bounds = array<i64: 32, 32>}, {pipeline_mode = #tpu.pipeline_mode<synchronous>, transform_indices = @transform_5, window_bounds = array<i64: 32, 32>}, {pipeline_mode = #tpu.pipeline_mode<synchronous>, transform_indices = @transform_6, window_bounds = array<i64: 1, 32>}, {pipeline_mode = #tpu.pipeline_mode<synchronous>, transform_indices = @transform_7, window_bounds = array<i64: 1, 32>}, {pipeline_mode = #tpu.pipeline_mode<synchronous>, transform_indices = @transform_8, window_bounds = array<i64: 1, 1>}, {transform_indices = @transform_9, window_bounds = array<i64: 2, 8>}]} {
    %c0_i32 = arith.constant 0 : i32
    %0 = arith.cmpi eq, %arg1, %c0_i32 : i32
    %1 = arith.extui %0 : i1 to i32
    %c0_i32_0 = arith.constant 0 : i32
    %2 = arith.cmpi ne, %1, %c0_i32_0 : i32
    scf.if %2 {
      %cst_134 = arith.constant 0.000000e+00 : f32
      %319 = vector.broadcast %cst_134 : f32 to vector<2x32xf32>
      %c0_135 = arith.constant 0 : index
      %c0_136 = arith.constant 0 : index
      %320 = vector.load %arg12[%c0_135, %c0_136] : memref<2x32xf32, #tpu.memory_space<vmem>>, vector<2x32xf32>
      tpu.vector_store %arg12[%c0_135, %c0_136], %319 {strides = array<i32>} : memref<2x32xf32, #tpu.memory_space<vmem>>, vector<2x32xf32>,
    } else {
    }
    %c0 = arith.constant 0 : index
    %c0_1 = arith.constant 0 : index
    %3 = vector.load %arg5[%c0, %c0_1] : memref<32x32xf32, #tpu.memory_space<vmem>>, vector<32x32xf32>
    %c0_2 = arith.constant 0 : index
    %c0_3 = arith.constant 0 : index
    %4 = vector.load %arg6[%c0_2, %c0_3] : memref<32x32xf32, #tpu.memory_space<vmem>>, vector<32x32xf32>
    %c0_4 = arith.constant 0 : index
    %c0_5 = arith.constant 0 : index
    %5 = vector.load %arg7[%c0_4, %c0_5] : memref<32x32xf32, #tpu.memory_space<vmem>>, vector<32x32xf32>
    %c0_6 = arith.constant 0 : index
    %c0_7 = arith.constant 0 : index
    %6 = vector.load %arg8[%c0_6, %c0_7] : memref<1x32xf32, #tpu.memory_space<vmem>>, vector<1x32xf32>
    %7 = vector.shape_cast %6 : vector<1x32xf32> to vector<1x32xf32>
    %8 = vector.broadcast %7 : vector<1x32xf32> to vector<2x32xf32>
    %c0_8 = arith.constant 0 : index
    %c0_9 = arith.constant 0 : index
    %9 = vector.load %arg12[%c0_8, %c0_9] : memref<2x32xf32, #tpu.memory_space<vmem>>, vector<2x32xf32>
    %c0_i32_10 = arith.constant 0 : i32
    %cst = arith.constant dense<0.000000e+00> : vector<2x32xf32>
    %10 = tpu.matmul %9, %3, %cst {dimension_numbers = #tpu.dot_dimension_numbers<[1], [0], [0], [1], [0, 0, 1, 1], [], []>} : vector<2x32xf32>, vector<32x32xf32>, vector<2x32xf32> -> vector<2x32xf32>
    %cst_11 = arith.constant dense<0.000000e+00> : vector<2x32xf32>
    %11 = tpu.matmul %9, %4, %cst_11 {dimension_numbers = #tpu.dot_dimension_numbers<[1], [0], [0], [1], [0, 0, 1, 1], [], []>} : vector<2x32xf32>, vector<32x32xf32>, vector<2x32xf32> -> vector<2x32xf32>
    %cst_12 = arith.constant dense<0.000000e+00> : vector<2x32xf32>
    %12 = tpu.matmul %9, %5, %cst_12 {dimension_numbers = #tpu.dot_dimension_numbers<[1], [0], [0], [1], [0, 0, 1, 1], [], []>} : vector<2x32xf32>, vector<32x32xf32>, vector<2x32xf32> -> vector<2x32xf32>
    %13 = arith.index_cast %c0_i32_10 : i32 to index
    %c0_13 = arith.constant 0 : index
    %c0_14 = arith.constant 0 : index
    %14 = vector.load %arg2[%13, %c0_13, %c0_14] : memref<8x2x32xf32, #tpu.memory_space<vmem>>, vector<1x2x32xf32>
    %15 = vector.shape_cast %14 : vector<1x2x32xf32> to vector<2x32xf32>
    %16 = arith.addf %15, %10 : vector<2x32xf32>
    %17 = arith.negf %16 : vector<2x32xf32>
    %18 = math.exp %17 : vector<2x32xf32>
    %cst_15 = arith.constant 1.000000e+00 : f32
    %19 = vector.broadcast %cst_15 : f32 to vector<2x32xf32>
    %20 = arith.addf %19, %18 : vector<2x32xf32>
    %21 = arith.divf %19, %20 : vector<2x32xf32>
    %22 = arith.index_cast %c0_i32_10 : i32 to index
    %c0_16 = arith.constant 0 : index
    %c0_17 = arith.constant 0 : index
    %23 = vector.load %arg3[%22, %c0_16, %c0_17] : memref<8x2x32xf32, #tpu.memory_space<vmem>>, vector<1x2x32xf32>
    %24 = vector.shape_cast %23 : vector<1x2x32xf32> to vector<2x32xf32>
    %25 = arith.addf %24, %11 : vector<2x32xf32>
    %26 = arith.negf %25 : vector<2x32xf32>
    %27 = math.exp %26 : vector<2x32xf32>
    %cst_18 = arith.constant 1.000000e+00 : f32
    %28 = vector.broadcast %cst_18 : f32 to vector<2x32xf32>
    %29 = arith.addf %28, %27 : vector<2x32xf32>
    %30 = arith.divf %28, %29 : vector<2x32xf32>
    %31 = arith.index_cast %c0_i32_10 : i32 to index
    %c0_19 = arith.constant 0 : index
    %c0_20 = arith.constant 0 : index
    %32 = vector.load %arg4[%31, %c0_19, %c0_20] : memref<8x2x32xf32, #tpu.memory_space<vmem>>, vector<1x2x32xf32>
    %33 = vector.shape_cast %32 : vector<1x2x32xf32> to vector<2x32xf32>
    %34 = arith.addf %12, %8 : vector<2x32xf32>
    %35 = arith.mulf %21, %34 : vector<2x32xf32>
    %36 = arith.addf %33, %35 : vector<2x32xf32>
    %37 = math.tanh %36 : vector<2x32xf32>
    %cst_21 = arith.constant 1.000000e+00 : f32
    %38 = vector.broadcast %cst_21 : f32 to vector<2x32xf32>
    %39 = arith.subf %38, %30 : vector<2x32xf32>
    %40 = arith.mulf %39, %37 : vector<2x32xf32>
    %41 = arith.mulf %30, %9 : vector<2x32xf32>
    %42 = arith.addf %40, %41 : vector<2x32xf32>
    %43 = arith.index_cast %c0_i32_10 : i32 to index
    %c0_22 = arith.constant 0 : index
    %c0_23 = arith.constant 0 : index
    %44 = vector.load %arg13[%43, %c0_22, %c0_23] : memref<8x2x32xf32, #tpu.memory_space<vmem>>, vector<1x2x32xf32>
    %45 = vector.shape_cast %44 : vector<1x2x32xf32> to vector<2x32xf32>
    %46 = vector.shape_cast %42 : vector<2x32xf32> to vector<1x2x32xf32>
    tpu.vector_store %arg13[%43, %c0_22, %c0_23], %46 {strides = array<i32>} : memref<8x2x32xf32, #tpu.memory_space<vmem>>, vector<1x2x32xf32>,
    %c1_i32 = arith.constant 1 : i32
    %cst_24 = arith.constant dense<0.000000e+00> : vector<2x32xf32>
    %47 = tpu.matmul %42, %3, %cst_24 {dimension_numbers = #tpu.dot_dimension_numbers<[1], [0], [0], [1], [0, 0, 1, 1], [], []>} : vector<2x32xf32>, vector<32x32xf32>, vector<2x32xf32> -> vector<2x32xf32>
    %cst_25 = arith.constant dense<0.000000e+00> : vector<2x32xf32>
    %48 = tpu.matmul %42, %4, %cst_25 {dimension_numbers = #tpu.dot_dimension_numbers<[1], [0], [0], [1], [0, 0, 1, 1], [], []>} : vector<2x32xf32>, vector<32x32xf32>, vector<2x32xf32> -> vector<2x32xf32>
    %cst_26 = arith.constant dense<0.000000e+00> : vector<2x32xf32>
    %49 = tpu.matmul %42, %5, %cst_26 {dimension_numbers = #tpu.dot_dimension_numbers<[1], [0], [0], [1], [0, 0, 1, 1], [], []>} : vector<2x32xf32>, vector<32x32xf32>, vector<2x32xf32> -> vector<2x32xf32>
    %50 = arith.index_cast %c1_i32 : i32 to index
    %c0_27 = arith.constant 0 : index
    %c0_28 = arith.constant 0 : index
    %51 = vector.load %arg2[%50, %c0_27, %c0_28] : memref<8x2x32xf32, #tpu.memory_space<vmem>>, vector<1x2x32xf32>
    %52 = vector.shape_cast %51 : vector<1x2x32xf32> to vector<2x32xf32>
    %53 = arith.addf %52, %47 : vector<2x32xf32>
    %54 = arith.negf %53 : vector<2x32xf32>
    %55 = math.exp %54 : vector<2x32xf32>
    %cst_29 = arith.constant 1.000000e+00 : f32
    %56 = vector.broadcast %cst_29 : f32 to vector<2x32xf32>
    %57 = arith.addf %56, %55 : vector<2x32xf32>
    %58 = arith.divf %56, %57 : vector<2x32xf32>
    %59 = arith.index_cast %c1_i32 : i32 to index
    %c0_30 = arith.constant 0 : index
    %c0_31 = arith.constant 0 : index
    %60 = vector.load %arg3[%59, %c0_30, %c0_31] : memref<8x2x32xf32, #tpu.memory_space<vmem>>, vector<1x2x32xf32>
    %61 = vector.shape_cast %60 : vector<1x2x32xf32> to vector<2x32xf32>
    %62 = arith.addf %61, %48 : vector<2x32xf32>
    %63 = arith.negf %62 : vector<2x32xf32>
    %64 = math.exp %63 : vector<2x32xf32>
    %cst_32 = arith.constant 1.000000e+00 : f32
    %65 = vector.broadcast %cst_32 : f32 to vector<2x32xf32>
    %66 = arith.addf %65, %64 : vector<2x32xf32>
    %67 = arith.divf %65, %66 : vector<2x32xf32>
    %68 = arith.index_cast %c1_i32 : i32 to index
    %c0_33 = arith.constant 0 : index
    %c0_34 = arith.constant 0 : index
    %69 = vector.load %arg4[%68, %c0_33, %c0_34] : memref<8x2x32xf32, #tpu.memory_space<vmem>>, vector<1x2x32xf32>
    %70 = vector.shape_cast %69 : vector<1x2x32xf32> to vector<2x32xf32>
    %71 = arith.addf %49, %8 : vector<2x32xf32>
    %72 = arith.mulf %58, %71 : vector<2x32xf32>
    %73 = arith.addf %70, %72 : vector<2x32xf32>
    %74 = math.tanh %73 : vector<2x32xf32>
    %cst_35 = arith.constant 1.000000e+00 : f32
    %75 = vector.broadcast %cst_35 : f32 to vector<2x32xf32>
    %76 = arith.subf %75, %67 : vector<2x32xf32>
    %77 = arith.mulf %76, %74 : vector<2x32xf32>
    %78 = arith.mulf %67, %42 : vector<2x32xf32>
    %79 = arith.addf %77, %78 : vector<2x32xf32>
    %80 = arith.index_cast %c1_i32 : i32 to index
    %c0_36 = arith.constant 0 : index
    %c0_37 = arith.constant 0 : index
    %81 = vector.load %arg13[%80, %c0_36, %c0_37] : memref<8x2x32xf32, #tpu.memory_space<vmem>>, vector<1x2x32xf32>
    %82 = vector.shape_cast %81 : vector<1x2x32xf32> to vector<2x32xf32>
    %83 = vector.shape_cast %79 : vector<2x32xf32> to vector<1x2x32xf32>
    tpu.vector_store %arg13[%80, %c0_36, %c0_37], %83 {strides = array<i32>} : memref<8x2x32xf32, #tpu.memory_space<vmem>>, vector<1x2x32xf32>,
    %c2_i32 = arith.constant 2 : i32
    %cst_38 = arith.constant dense<0.000000e+00> : vector<2x32xf32>
    %84 = tpu.matmul %79, %3, %cst_38 {dimension_numbers = #tpu.dot_dimension_numbers<[1], [0], [0], [1], [0, 0, 1, 1], [], []>} : vector<2x32xf32>, vector<32x32xf32>, vector<2x32xf32> -> vector<2x32xf32>
    %cst_39 = arith.constant dense<0.000000e+00> : vector<2x32xf32>
    %85 = tpu.matmul %79, %4, %cst_39 {dimension_numbers = #tpu.dot_dimension_numbers<[1], [0], [0], [1], [0, 0, 1, 1], [], []>} : vector<2x32xf32>, vector<32x32xf32>, vector<2x32xf32> -> vector<2x32xf32>
    %cst_40 = arith.constant dense<0.000000e+00> : vector<2x32xf32>
    %86 = tpu.matmul %79, %5, %cst_40 {dimension_numbers = #tpu.dot_dimension_numbers<[1], [0], [0], [1], [0, 0, 1, 1], [], []>} : vector<2x32xf32>, vector<32x32xf32>, vector<2x32xf32> -> vector<2x32xf32>
    %87 = arith.index_cast %c2_i32 : i32 to index
    %c0_41 = arith.constant 0 : index
    %c0_42 = arith.constant 0 : index
    %88 = vector.load %arg2[%87, %c0_41, %c0_42] : memref<8x2x32xf32, #tpu.memory_space<vmem>>, vector<1x2x32xf32>
    %89 = vector.shape_cast %88 : vector<1x2x32xf32> to vector<2x32xf32>
    %90 = arith.addf %89, %84 : vector<2x32xf32>
    %91 = arith.negf %90 : vector<2x32xf32>
    %92 = math.exp %91 : vector<2x32xf32>
    %cst_43 = arith.constant 1.000000e+00 : f32
    %93 = vector.broadcast %cst_43 : f32 to vector<2x32xf32>
    %94 = arith.addf %93, %92 : vector<2x32xf32>
    %95 = arith.divf %93, %94 : vector<2x32xf32>
    %96 = arith.index_cast %c2_i32 : i32 to index
    %c0_44 = arith.constant 0 : index
    %c0_45 = arith.constant 0 : index
    %97 = vector.load %arg3[%96, %c0_44, %c0_45] : memref<8x2x32xf32, #tpu.memory_space<vmem>>, vector<1x2x32xf32>
    %98 = vector.shape_cast %97 : vector<1x2x32xf32> to vector<2x32xf32>
    %99 = arith.addf %98, %85 : vector<2x32xf32>
    %100 = arith.negf %99 : vector<2x32xf32>
    %101 = math.exp %100 : vector<2x32xf32>
    %cst_46 = arith.constant 1.000000e+00 : f32
    %102 = vector.broadcast %cst_46 : f32 to vector<2x32xf32>
    %103 = arith.addf %102, %101 : vector<2x32xf32>
    %104 = arith.divf %102, %103 : vector<2x32xf32>
    %105 = arith.index_cast %c2_i32 : i32 to index
    %c0_47 = arith.constant 0 : index
    %c0_48 = arith.constant 0 : index
    %106 = vector.load %arg4[%105, %c0_47, %c0_48] : memref<8x2x32xf32, #tpu.memory_space<vmem>>, vector<1x2x32xf32>
    %107 = vector.shape_cast %106 : vector<1x2x32xf32> to vector<2x32xf32>
    %108 = arith.addf %86, %8 : vector<2x32xf32>
    %109 = arith.mulf %95, %108 : vector<2x32xf32>
    %110 = arith.addf %107, %109 : vector<2x32xf32>
    %111 = math.tanh %110 : vector<2x32xf32>
    %cst_49 = arith.constant 1.000000e+00 : f32
    %112 = vector.broadcast %cst_49 : f32 to vector<2x32xf32>
    %113 = arith.subf %112, %104 : vector<2x32xf32>
    %114 = arith.mulf %113, %111 : vector<2x32xf32>
    %115 = arith.mulf %104, %79 : vector<2x32xf32>
    %116 = arith.addf %114, %115 : vector<2x32xf32>
    %117 = arith.index_cast %c2_i32 : i32 to index
    %c0_50 = arith.constant 0 : index
    %c0_51 = arith.constant 0 : index
    %118 = vector.load %arg13[%117, %c0_50, %c0_51] : memref<8x2x32xf32, #tpu.memory_space<vmem>>, vector<1x2x32xf32>
    %119 = vector.shape_cast %118 : vector<1x2x32xf32> to vector<2x32xf32>
    %120 = vector.shape_cast %116 : vector<2x32xf32> to vector<1x2x32xf32>
    tpu.vector_store %arg13[%117, %c0_50, %c0_51], %120 {strides = array<i32>} : memref<8x2x32xf32, #tpu.memory_space<vmem>>, vector<1x2x32xf32>,
    %c3_i32 = arith.constant 3 : i32
    %cst_52 = arith.constant dense<0.000000e+00> : vector<2x32xf32>
    %121 = tpu.matmul %116, %3, %cst_52 {dimension_numbers = #tpu.dot_dimension_numbers<[1], [0], [0], [1], [0, 0, 1, 1], [], []>} : vector<2x32xf32>, vector<32x32xf32>, vector<2x32xf32> -> vector<2x32xf32>
    %cst_53 = arith.constant dense<0.000000e+00> : vector<2x32xf32>
    %122 = tpu.matmul %116, %4, %cst_53 {dimension_numbers = #tpu.dot_dimension_numbers<[1], [0], [0], [1], [0, 0, 1, 1], [], []>} : vector<2x32xf32>, vector<32x32xf32>, vector<2x32xf32> -> vector<2x32xf32>
    %cst_54 = arith.constant dense<0.000000e+00> : vector<2x32xf32>
    %123 = tpu.matmul %116, %5, %cst_54 {dimension_numbers = #tpu.dot_dimension_numbers<[1], [0], [0], [1], [0, 0, 1, 1], [], []>} : vector<2x32xf32>, vector<32x32xf32>, vector<2x32xf32> -> vector<2x32xf32>
    %124 = arith.index_cast %c3_i32 : i32 to index
    %c0_55 = arith.constant 0 : index
    %c0_56 = arith.constant 0 : index
    %125 = vector.load %arg2[%124, %c0_55, %c0_56] : memref<8x2x32xf32, #tpu.memory_space<vmem>>, vector<1x2x32xf32>
    %126 = vector.shape_cast %125 : vector<1x2x32xf32> to vector<2x32xf32>
    %127 = arith.addf %126, %121 : vector<2x32xf32>
    %128 = arith.negf %127 : vector<2x32xf32>
    %129 = math.exp %128 : vector<2x32xf32>
    %cst_57 = arith.constant 1.000000e+00 : f32
    %130 = vector.broadcast %cst_57 : f32 to vector<2x32xf32>
    %131 = arith.addf %130, %129 : vector<2x32xf32>
    %132 = arith.divf %130, %131 : vector<2x32xf32>
    %133 = arith.index_cast %c3_i32 : i32 to index
    %c0_58 = arith.constant 0 : index
    %c0_59 = arith.constant 0 : index
    %134 = vector.load %arg3[%133, %c0_58, %c0_59] : memref<8x2x32xf32, #tpu.memory_space<vmem>>, vector<1x2x32xf32>
    %135 = vector.shape_cast %134 : vector<1x2x32xf32> to vector<2x32xf32>
    %136 = arith.addf %135, %122 : vector<2x32xf32>
    %137 = arith.negf %136 : vector<2x32xf32>
    %138 = math.exp %137 : vector<2x32xf32>
    %cst_60 = arith.constant 1.000000e+00 : f32
    %139 = vector.broadcast %cst_60 : f32 to vector<2x32xf32>
    %140 = arith.addf %139, %138 : vector<2x32xf32>
    %141 = arith.divf %139, %140 : vector<2x32xf32>
    %142 = arith.index_cast %c3_i32 : i32 to index
    %c0_61 = arith.constant 0 : index
    %c0_62 = arith.constant 0 : index
    %143 = vector.load %arg4[%142, %c0_61, %c0_62] : memref<8x2x32xf32, #tpu.memory_space<vmem>>, vector<1x2x32xf32>
    %144 = vector.shape_cast %143 : vector<1x2x32xf32> to vector<2x32xf32>
    %145 = arith.addf %123, %8 : vector<2x32xf32>
    %146 = arith.mulf %132, %145 : vector<2x32xf32>
    %147 = arith.addf %144, %146 : vector<2x32xf32>
    %148 = math.tanh %147 : vector<2x32xf32>
    %cst_63 = arith.constant 1.000000e+00 : f32
    %149 = vector.broadcast %cst_63 : f32 to vector<2x32xf32>
    %150 = arith.subf %149, %141 : vector<2x32xf32>
    %151 = arith.mulf %150, %148 : vector<2x32xf32>
    %152 = arith.mulf %141, %116 : vector<2x32xf32>
    %153 = arith.addf %151, %152 : vector<2x32xf32>
    %154 = arith.index_cast %c3_i32 : i32 to index
    %c0_64 = arith.constant 0 : index
    %c0_65 = arith.constant 0 : index
    %155 = vector.load %arg13[%154, %c0_64, %c0_65] : memref<8x2x32xf32, #tpu.memory_space<vmem>>, vector<1x2x32xf32>
    %156 = vector.shape_cast %155 : vector<1x2x32xf32> to vector<2x32xf32>
    %157 = vector.shape_cast %153 : vector<2x32xf32> to vector<1x2x32xf32>
    tpu.vector_store %arg13[%154, %c0_64, %c0_65], %157 {strides = array<i32>} : memref<8x2x32xf32, #tpu.memory_space<vmem>>, vector<1x2x32xf32>,
    %c4_i32 = arith.constant 4 : i32
    %cst_66 = arith.constant dense<0.000000e+00> : vector<2x32xf32>
    %158 = tpu.matmul %153, %3, %cst_66 {dimension_numbers = #tpu.dot_dimension_numbers<[1], [0], [0], [1], [0, 0, 1, 1], [], []>} : vector<2x32xf32>, vector<32x32xf32>, vector<2x32xf32> -> vector<2x32xf32>
    %cst_67 = arith.constant dense<0.000000e+00> : vector<2x32xf32>
    %159 = tpu.matmul %153, %4, %cst_67 {dimension_numbers = #tpu.dot_dimension_numbers<[1], [0], [0], [1], [0, 0, 1, 1], [], []>} : vector<2x32xf32>, vector<32x32xf32>, vector<2x32xf32> -> vector<2x32xf32>
    %cst_68 = arith.constant dense<0.000000e+00> : vector<2x32xf32>
    %160 = tpu.matmul %153, %5, %cst_68 {dimension_numbers = #tpu.dot_dimension_numbers<[1], [0], [0], [1], [0, 0, 1, 1], [], []>} : vector<2x32xf32>, vector<32x32xf32>, vector<2x32xf32> -> vector<2x32xf32>
    %161 = arith.index_cast %c4_i32 : i32 to index
    %c0_69 = arith.constant 0 : index
    %c0_70 = arith.constant 0 : index
    %162 = vector.load %arg2[%161, %c0_69, %c0_70] : memref<8x2x32xf32, #tpu.memory_space<vmem>>, vector<1x2x32xf32>
    %163 = vector.shape_cast %162 : vector<1x2x32xf32> to vector<2x32xf32>
    %164 = arith.addf %163, %158 : vector<2x32xf32>
    %165 = arith.negf %164 : vector<2x32xf32>
    %166 = math.exp %165 : vector<2x32xf32>
    %cst_71 = arith.constant 1.000000e+00 : f32
    %167 = vector.broadcast %cst_71 : f32 to vector<2x32xf32>
    %168 = arith.addf %167, %166 : vector<2x32xf32>
    %169 = arith.divf %167, %168 : vector<2x32xf32>
    %170 = arith.index_cast %c4_i32 : i32 to index
    %c0_72 = arith.constant 0 : index
    %c0_73 = arith.constant 0 : index
    %171 = vector.load %arg3[%170, %c0_72, %c0_73] : memref<8x2x32xf32, #tpu.memory_space<vmem>>, vector<1x2x32xf32>
    %172 = vector.shape_cast %171 : vector<1x2x32xf32> to vector<2x32xf32>
    %173 = arith.addf %172, %159 : vector<2x32xf32>
    %174 = arith.negf %173 : vector<2x32xf32>
    %175 = math.exp %174 : vector<2x32xf32>
    %cst_74 = arith.constant 1.000000e+00 : f32
    %176 = vector.broadcast %cst_74 : f32 to vector<2x32xf32>
    %177 = arith.addf %176, %175 : vector<2x32xf32>
    %178 = arith.divf %176, %177 : vector<2x32xf32>
    %179 = arith.index_cast %c4_i32 : i32 to index
    %c0_75 = arith.constant 0 : index
    %c0_76 = arith.constant 0 : index
    %180 = vector.load %arg4[%179, %c0_75, %c0_76] : memref<8x2x32xf32, #tpu.memory_space<vmem>>, vector<1x2x32xf32>
    %181 = vector.shape_cast %180 : vector<1x2x32xf32> to vector<2x32xf32>
    %182 = arith.addf %160, %8 : vector<2x32xf32>
    %183 = arith.mulf %169, %182 : vector<2x32xf32>
    %184 = arith.addf %181, %183 : vector<2x32xf32>
    %185 = math.tanh %184 : vector<2x32xf32>
    %cst_77 = arith.constant 1.000000e+00 : f32
    %186 = vector.broadcast %cst_77 : f32 to vector<2x32xf32>
    %187 = arith.subf %186, %178 : vector<2x32xf32>
    %188 = arith.mulf %187, %185 : vector<2x32xf32>
    %189 = arith.mulf %178, %153 : vector<2x32xf32>
    %190 = arith.addf %188, %189 : vector<2x32xf32>
    %191 = arith.index_cast %c4_i32 : i32 to index
    %c0_78 = arith.constant 0 : index
    %c0_79 = arith.constant 0 : index
    %192 = vector.load %arg13[%191, %c0_78, %c0_79] : memref<8x2x32xf32, #tpu.memory_space<vmem>>, vector<1x2x32xf32>
    %193 = vector.shape_cast %192 : vector<1x2x32xf32> to vector<2x32xf32>
    %194 = vector.shape_cast %190 : vector<2x32xf32> to vector<1x2x32xf32>
    tpu.vector_store %arg13[%191, %c0_78, %c0_79], %194 {strides = array<i32>} : memref<8x2x32xf32, #tpu.memory_space<vmem>>, vector<1x2x32xf32>,
    %c5_i32 = arith.constant 5 : i32
    %cst_80 = arith.constant dense<0.000000e+00> : vector<2x32xf32>
    %195 = tpu.matmul %190, %3, %cst_80 {dimension_numbers = #tpu.dot_dimension_numbers<[1], [0], [0], [1], [0, 0, 1, 1], [], []>} : vector<2x32xf32>, vector<32x32xf32>, vector<2x32xf32> -> vector<2x32xf32>
    %cst_81 = arith.constant dense<0.000000e+00> : vector<2x32xf32>
    %196 = tpu.matmul %190, %4, %cst_81 {dimension_numbers = #tpu.dot_dimension_numbers<[1], [0], [0], [1], [0, 0, 1, 1], [], []>} : vector<2x32xf32>, vector<32x32xf32>, vector<2x32xf32> -> vector<2x32xf32>
    %cst_82 = arith.constant dense<0.000000e+00> : vector<2x32xf32>
    %197 = tpu.matmul %190, %5, %cst_82 {dimension_numbers = #tpu.dot_dimension_numbers<[1], [0], [0], [1], [0, 0, 1, 1], [], []>} : vector<2x32xf32>, vector<32x32xf32>, vector<2x32xf32> -> vector<2x32xf32>
    %198 = arith.index_cast %c5_i32 : i32 to index
    %c0_83 = arith.constant 0 : index
    %c0_84 = arith.constant 0 : index
    %199 = vector.load %arg2[%198, %c0_83, %c0_84] : memref<8x2x32xf32, #tpu.memory_space<vmem>>, vector<1x2x32xf32>
    %200 = vector.shape_cast %199 : vector<1x2x32xf32> to vector<2x32xf32>
    %201 = arith.addf %200, %195 : vector<2x32xf32>
    %202 = arith.negf %201 : vector<2x32xf32>
    %203 = math.exp %202 : vector<2x32xf32>
    %cst_85 = arith.constant 1.000000e+00 : f32
    %204 = vector.broadcast %cst_85 : f32 to vector<2x32xf32>
    %205 = arith.addf %204, %203 : vector<2x32xf32>
    %206 = arith.divf %204, %205 : vector<2x32xf32>
    %207 = arith.index_cast %c5_i32 : i32 to index
    %c0_86 = arith.constant 0 : index
    %c0_87 = arith.constant 0 : index
    %208 = vector.load %arg3[%207, %c0_86, %c0_87] : memref<8x2x32xf32, #tpu.memory_space<vmem>>, vector<1x2x32xf32>
    %209 = vector.shape_cast %208 : vector<1x2x32xf32> to vector<2x32xf32>
    %210 = arith.addf %209, %196 : vector<2x32xf32>
    %211 = arith.negf %210 : vector<2x32xf32>
    %212 = math.exp %211 : vector<2x32xf32>
    %cst_88 = arith.constant 1.000000e+00 : f32
    %213 = vector.broadcast %cst_88 : f32 to vector<2x32xf32>
    %214 = arith.addf %213, %212 : vector<2x32xf32>
    %215 = arith.divf %213, %214 : vector<2x32xf32>
    %216 = arith.index_cast %c5_i32 : i32 to index
    %c0_89 = arith.constant 0 : index
    %c0_90 = arith.constant 0 : index
    %217 = vector.load %arg4[%216, %c0_89, %c0_90] : memref<8x2x32xf32, #tpu.memory_space<vmem>>, vector<1x2x32xf32>
    %218 = vector.shape_cast %217 : vector<1x2x32xf32> to vector<2x32xf32>
    %219 = arith.addf %197, %8 : vector<2x32xf32>
    %220 = arith.mulf %206, %219 : vector<2x32xf32>
    %221 = arith.addf %218, %220 : vector<2x32xf32>
    %222 = math.tanh %221 : vector<2x32xf32>
    %cst_91 = arith.constant 1.000000e+00 : f32
    %223 = vector.broadcast %cst_91 : f32 to vector<2x32xf32>
    %224 = arith.subf %223, %215 : vector<2x32xf32>
    %225 = arith.mulf %224, %222 : vector<2x32xf32>
    %226 = arith.mulf %215, %190 : vector<2x32xf32>
    %227 = arith.addf %225, %226 : vector<2x32xf32>
    %228 = arith.index_cast %c5_i32 : i32 to index
    %c0_92 = arith.constant 0 : index
    %c0_93 = arith.constant 0 : index
    %229 = vector.load %arg13[%228, %c0_92, %c0_93] : memref<8x2x32xf32, #tpu.memory_space<vmem>>, vector<1x2x32xf32>
    %230 = vector.shape_cast %229 : vector<1x2x32xf32> to vector<2x32xf32>
    %231 = vector.shape_cast %227 : vector<2x32xf32> to vector<1x2x32xf32>
    tpu.vector_store %arg13[%228, %c0_92, %c0_93], %231 {strides = array<i32>} : memref<8x2x32xf32, #tpu.memory_space<vmem>>, vector<1x2x32xf32>,
    %c6_i32 = arith.constant 6 : i32
    %cst_94 = arith.constant dense<0.000000e+00> : vector<2x32xf32>
    %232 = tpu.matmul %227, %3, %cst_94 {dimension_numbers = #tpu.dot_dimension_numbers<[1], [0], [0], [1], [0, 0, 1, 1], [], []>} : vector<2x32xf32>, vector<32x32xf32>, vector<2x32xf32> -> vector<2x32xf32>
    %cst_95 = arith.constant dense<0.000000e+00> : vector<2x32xf32>
    %233 = tpu.matmul %227, %4, %cst_95 {dimension_numbers = #tpu.dot_dimension_numbers<[1], [0], [0], [1], [0, 0, 1, 1], [], []>} : vector<2x32xf32>, vector<32x32xf32>, vector<2x32xf32> -> vector<2x32xf32>
    %cst_96 = arith.constant dense<0.000000e+00> : vector<2x32xf32>
    %234 = tpu.matmul %227, %5, %cst_96 {dimension_numbers = #tpu.dot_dimension_numbers<[1], [0], [0], [1], [0, 0, 1, 1], [], []>} : vector<2x32xf32>, vector<32x32xf32>, vector<2x32xf32> -> vector<2x32xf32>
    %235 = arith.index_cast %c6_i32 : i32 to index
    %c0_97 = arith.constant 0 : index
    %c0_98 = arith.constant 0 : index
    %236 = vector.load %arg2[%235, %c0_97, %c0_98] : memref<8x2x32xf32, #tpu.memory_space<vmem>>, vector<1x2x32xf32>
    %237 = vector.shape_cast %236 : vector<1x2x32xf32> to vector<2x32xf32>
    %238 = arith.addf %237, %232 : vector<2x32xf32>
    %239 = arith.negf %238 : vector<2x32xf32>
    %240 = math.exp %239 : vector<2x32xf32>
    %cst_99 = arith.constant 1.000000e+00 : f32
    %241 = vector.broadcast %cst_99 : f32 to vector<2x32xf32>
    %242 = arith.addf %241, %240 : vector<2x32xf32>
    %243 = arith.divf %241, %242 : vector<2x32xf32>
    %244 = arith.index_cast %c6_i32 : i32 to index
    %c0_100 = arith.constant 0 : index
    %c0_101 = arith.constant 0 : index
    %245 = vector.load %arg3[%244, %c0_100, %c0_101] : memref<8x2x32xf32, #tpu.memory_space<vmem>>, vector<1x2x32xf32>
    %246 = vector.shape_cast %245 : vector<1x2x32xf32> to vector<2x32xf32>
    %247 = arith.addf %246, %233 : vector<2x32xf32>
    %248 = arith.negf %247 : vector<2x32xf32>
    %249 = math.exp %248 : vector<2x32xf32>
    %cst_102 = arith.constant 1.000000e+00 : f32
    %250 = vector.broadcast %cst_102 : f32 to vector<2x32xf32>
    %251 = arith.addf %250, %249 : vector<2x32xf32>
    %252 = arith.divf %250, %251 : vector<2x32xf32>
    %253 = arith.index_cast %c6_i32 : i32 to index
    %c0_103 = arith.constant 0 : index
    %c0_104 = arith.constant 0 : index
    %254 = vector.load %arg4[%253, %c0_103, %c0_104] : memref<8x2x32xf32, #tpu.memory_space<vmem>>, vector<1x2x32xf32>
    %255 = vector.shape_cast %254 : vector<1x2x32xf32> to vector<2x32xf32>
    %256 = arith.addf %234, %8 : vector<2x32xf32>
    %257 = arith.mulf %243, %256 : vector<2x32xf32>
    %258 = arith.addf %255, %257 : vector<2x32xf32>
    %259 = math.tanh %258 : vector<2x32xf32>
    %cst_105 = arith.constant 1.000000e+00 : f32
    %260 = vector.broadcast %cst_105 : f32 to vector<2x32xf32>
    %261 = arith.subf %260, %252 : vector<2x32xf32>
    %262 = arith.mulf %261, %259 : vector<2x32xf32>
    %263 = arith.mulf %252, %227 : vector<2x32xf32>
    %264 = arith.addf %262, %263 : vector<2x32xf32>
    %265 = arith.index_cast %c6_i32 : i32 to index
    %c0_106 = arith.constant 0 : index
    %c0_107 = arith.constant 0 : index
    %266 = vector.load %arg13[%265, %c0_106, %c0_107] : memref<8x2x32xf32, #tpu.memory_space<vmem>>, vector<1x2x32xf32>
    %267 = vector.shape_cast %266 : vector<1x2x32xf32> to vector<2x32xf32>
    %268 = vector.shape_cast %264 : vector<2x32xf32> to vector<1x2x32xf32>
    tpu.vector_store %arg13[%265, %c0_106, %c0_107], %268 {strides = array<i32>} : memref<8x2x32xf32, #tpu.memory_space<vmem>>, vector<1x2x32xf32>,
    %c7_i32 = arith.constant 7 : i32
    %cst_108 = arith.constant dense<0.000000e+00> : vector<2x32xf32>
    %269 = tpu.matmul %264, %3, %cst_108 {dimension_numbers = #tpu.dot_dimension_numbers<[1], [0], [0], [1], [0, 0, 1, 1], [], []>} : vector<2x32xf32>, vector<32x32xf32>, vector<2x32xf32> -> vector<2x32xf32>
    %cst_109 = arith.constant dense<0.000000e+00> : vector<2x32xf32>
    %270 = tpu.matmul %264, %4, %cst_109 {dimension_numbers = #tpu.dot_dimension_numbers<[1], [0], [0], [1], [0, 0, 1, 1], [], []>} : vector<2x32xf32>, vector<32x32xf32>, vector<2x32xf32> -> vector<2x32xf32>
    %cst_110 = arith.constant dense<0.000000e+00> : vector<2x32xf32>
    %271 = tpu.matmul %264, %5, %cst_110 {dimension_numbers = #tpu.dot_dimension_numbers<[1], [0], [0], [1], [0, 0, 1, 1], [], []>} : vector<2x32xf32>, vector<32x32xf32>, vector<2x32xf32> -> vector<2x32xf32>
    %272 = arith.index_cast %c7_i32 : i32 to index
    %c0_111 = arith.constant 0 : index
    %c0_112 = arith.constant 0 : index
    %273 = vector.load %arg2[%272, %c0_111, %c0_112] : memref<8x2x32xf32, #tpu.memory_space<vmem>>, vector<1x2x32xf32>
    %274 = vector.shape_cast %273 : vector<1x2x32xf32> to vector<2x32xf32>
    %275 = arith.addf %274, %269 : vector<2x32xf32>
    %276 = arith.negf %275 : vector<2x32xf32>
    %277 = math.exp %276 : vector<2x32xf32>
    %cst_113 = arith.constant 1.000000e+00 : f32
    %278 = vector.broadcast %cst_113 : f32 to vector<2x32xf32>
    %279 = arith.addf %278, %277 : vector<2x32xf32>
    %280 = arith.divf %278, %279 : vector<2x32xf32>
    %281 = arith.index_cast %c7_i32 : i32 to index
    %c0_114 = arith.constant 0 : index
    %c0_115 = arith.constant 0 : index
    %282 = vector.load %arg3[%281, %c0_114, %c0_115] : memref<8x2x32xf32, #tpu.memory_space<vmem>>, vector<1x2x32xf32>
    %283 = vector.shape_cast %282 : vector<1x2x32xf32> to vector<2x32xf32>
    %284 = arith.addf %283, %270 : vector<2x32xf32>
    %285 = arith.negf %284 : vector<2x32xf32>
    %286 = math.exp %285 : vector<2x32xf32>
    %cst_116 = arith.constant 1.000000e+00 : f32
    %287 = vector.broadcast %cst_116 : f32 to vector<2x32xf32>
    %288 = arith.addf %287, %286 : vector<2x32xf32>
    %289 = arith.divf %287, %288 : vector<2x32xf32>
    %290 = arith.index_cast %c7_i32 : i32 to index
    %c0_117 = arith.constant 0 : index
    %c0_118 = arith.constant 0 : index
    %291 = vector.load %arg4[%290, %c0_117, %c0_118] : memref<8x2x32xf32, #tpu.memory_space<vmem>>, vector<1x2x32xf32>
    %292 = vector.shape_cast %291 : vector<1x2x32xf32> to vector<2x32xf32>
    %293 = arith.addf %271, %8 : vector<2x32xf32>
    %294 = arith.mulf %280, %293 : vector<2x32xf32>
    %295 = arith.addf %292, %294 : vector<2x32xf32>
    %296 = math.tanh %295 : vector<2x32xf32>
    %cst_119 = arith.constant 1.000000e+00 : f32
    %297 = vector.broadcast %cst_119 : f32 to vector<2x32xf32>
    %298 = arith.subf %297, %289 : vector<2x32xf32>
    %299 = arith.mulf %298, %296 : vector<2x32xf32>
    %300 = arith.mulf %289, %264 : vector<2x32xf32>
    %301 = arith.addf %299, %300 : vector<2x32xf32>
    %302 = arith.index_cast %c7_i32 : i32 to index
    %c0_120 = arith.constant 0 : index
    %c0_121 = arith.constant 0 : index
    %303 = vector.load %arg13[%302, %c0_120, %c0_121] : memref<8x2x32xf32, #tpu.memory_space<vmem>>, vector<1x2x32xf32>
    %304 = vector.shape_cast %303 : vector<1x2x32xf32> to vector<2x32xf32>
    %305 = vector.shape_cast %301 : vector<2x32xf32> to vector<1x2x32xf32>
    tpu.vector_store %arg13[%302, %c0_120, %c0_121], %305 {strides = array<i32>} : memref<8x2x32xf32, #tpu.memory_space<vmem>>, vector<1x2x32xf32>,
    %c8_i32 = arith.constant 8 : i32
    %c0_122 = arith.constant 0 : index
    %c0_123 = arith.constant 0 : index
    %306 = vector.load %arg12[%c0_122, %c0_123] : memref<2x32xf32, #tpu.memory_space<vmem>>, vector<2x32xf32>
    tpu.vector_store %arg12[%c0_122, %c0_123], %301 {strides = array<i32>} : memref<2x32xf32, #tpu.memory_space<vmem>>, vector<2x32xf32>,
    %c0_124 = arith.constant 0 : index
    %c0_125 = arith.constant 0 : index
    %307 = vector.load %arg9[%c0_124, %c0_125] : memref<1x32xf32, #tpu.memory_space<vmem>>, vector<1x32xf32>
    %c0_126 = arith.constant 0 : index
    %c0_127 = arith.constant 0 : index
    %c0_128 = arith.constant 0 : index
    %308 = vector.load %arg13[%c0_126, %c0_127, %c0_128] : memref<8x2x32xf32, #tpu.memory_space<vmem>>, vector<8x2x32xf32>
    %309 = vector.shape_cast %307 : vector<1x32xf32> to vector<1x1x32xf32>
    %310 = vector.broadcast %309 : vector<1x1x32xf32> to vector<8x2x32xf32>
    %311 = arith.mulf %308, %310 : vector<8x2x32xf32>
    %cst_129 = arith.constant dense<0.000000e+00> : vector<8x2xf32>
    %312 = vector.multi_reduction <add>, %311, %cst_129 [2] : vector<8x2x32xf32> to vector<8x2xf32>
    %313 = tpu.transpose %312, [1, 0] : vector<8x2xf32> -> vector<2x8xf32>
    %c0_130 = arith.constant 0 : index
    %c0_131 = arith.constant 0 : index
    %314 = vector.load %arg10[%c0_130, %c0_131] : memref<1x1xf32, #tpu.memory_space<vmem>>, vector<1x1xf32>
    %315 = vector.extract %314[0, 0] : f32 from vector<1x1xf32>
    %316 = vector.broadcast %315 : f32 to vector<2x8xf32>
    %317 = arith.addf %313, %316 : vector<2x8xf32>
    %c0_132 = arith.constant 0 : index
    %c0_133 = arith.constant 0 : index
    %318 = vector.load %arg11[%c0_132, %c0_133] : memref<2x8xf32, #tpu.memory_space<vmem>>, vector<2x8xf32>
    tpu.vector_store %arg11[%c0_132, %c0_133], %317 {strides = array<i32>} : memref<2x8xf32, #tpu.memory_space<vmem>>, vector<2x8xf32>,
    return
  }
  func.func @transform_0(%arg0: i32, %arg1: i32) -> (i32, i32, i32) {
    %c0_i32 = arith.constant 0 : i32
    %c0_i32_0 = arith.constant 0 : i32
    return %arg1, %arg0, %c0_i32 : i32, i32, i32
  }
  func.func @transform_1(%arg0: i32, %arg1: i32) -> (i32, i32, i32) {
    %c0_i32 = arith.constant 0 : i32
    %c0_i32_0 = arith.constant 0 : i32
    return %arg1, %arg0, %c0_i32 : i32, i32, i32
  }
  func.func @transform_2(%arg0: i32, %arg1: i32) -> (i32, i32, i32) {
    %c0_i32 = arith.constant 0 : i32
    %c0_i32_0 = arith.constant 0 : i32
    return %arg1, %arg0, %c0_i32 : i32, i32, i32
  }
  func.func @transform_3(%arg0: i32, %arg1: i32) -> (i32, i32) {
    %c0_i32 = arith.constant 0 : i32
    %c0_i32_0 = arith.constant 0 : i32
    %c0_i32_1 = arith.constant 0 : i32
    return %c0_i32, %c0_i32_0 : i32, i32
  }
  func.func @transform_4(%arg0: i32, %arg1: i32) -> (i32, i32) {
    %c0_i32 = arith.constant 0 : i32
    %c0_i32_0 = arith.constant 0 : i32
    %c0_i32_1 = arith.constant 0 : i32
    return %c0_i32, %c0_i32_0 : i32, i32
  }
  func.func @transform_5(%arg0: i32, %arg1: i32) -> (i32, i32) {
    %c0_i32 = arith.constant 0 : i32
    %c0_i32_0 = arith.constant 0 : i32
    %c0_i32_1 = arith.constant 0 : i32
    return %c0_i32, %c0_i32_0 : i32, i32
  }
  func.func @transform_6(%arg0: i32, %arg1: i32) -> (i32, i32) {
    %c0_i32 = arith.constant 0 : i32
    %c0_i32_0 = arith.constant 0 : i32
    %c0_i32_1 = arith.constant 0 : i32
    return %c0_i32, %c0_i32_0 : i32, i32
  }
  func.func @transform_7(%arg0: i32, %arg1: i32) -> (i32, i32) {
    %c0_i32 = arith.constant 0 : i32
    %c0_i32_0 = arith.constant 0 : i32
    %c0_i32_1 = arith.constant 0 : i32
    return %c0_i32, %c0_i32_0 : i32, i32
  }
  func.func @transform_8(%arg0: i32, %arg1: i32) -> (i32, i32) {
    %c0_i32 = arith.constant 0 : i32
    %c0_i32_0 = arith.constant 0 : i32
    %c0_i32_1 = arith.constant 0 : i32
    return %c0_i32, %c0_i32_0 : i32, i32
  }
  func.func @transform_9(%arg0: i32, %arg1: i32) -> (i32, i32) {
    %c0_i32 = arith.constant 0 : i32
    return %arg0, %arg1 : i32, i32
  }
}

</mosaic_0001>

<llo_original>
// kernel: tpu_custom_call.1
$region0: #{tpu_custom_call.1}
  #allocation0 [shape = 'u32[]', space=smem, size = 0x4, offset = 0x4, fixed_abs, tag = 'smem constant byte address 0x4 - core index']
  #allocation1 [shape = 'u32[72,128]{1,0:T(1,128)}', space=vmem, size = 0x9000, scoped, tag = 'internal scratch']
  #allocation2 [shape = 'f32[2,32]{1,0:T(2,128)}', space=vmem, size = 0x400, scoped, tag = 'scratch operand']
  #allocation3 [shape = 'f32[8,2,32]{2,1,0:T(2,128)}', space=vmem, size = 0x2000, scoped, tag = 'scratch operand']
  #allocation4 [shape = 'f32[1,1]{1,0:T(1,128)S(1)}', space=vmem, size = 0x200, scoped, tag = 'scoped memory for tpu_custom_call.1']
  %s0 = inlined_call_operand.hbm [shape: f32[8,2,32], index: 0, kind: input, shape index: {}]
  %s1 = inlined_call_operand.hbm [shape: f32[8,2,32], index: 1, kind: input, shape index: {}]
  %s2 = inlined_call_operand.hbm [shape: f32[8,2,32], index: 2, kind: input, shape index: {}]
  %s3 = inlined_call_operand.hbm [shape: f32[32,32], index: 3, kind: input, shape index: {}]
  %s4 = inlined_call_operand.hbm [shape: f32[32,32], index: 4, kind: input, shape index: {}]
  %s5 = inlined_call_operand.hbm [shape: f32[32,32], index: 5, kind: input, shape index: {}]
  %s6 = inlined_call_operand.vmem [shape: f32[1,32], index: 6, kind: input, shape index: {}]
  %s7 = inlined_call_operand.vmem [shape: f32[1,32], index: 7, kind: input, shape index: {}]
  %s8 = inlined_call_operand.<no memory space> [shape: f32[1,1], index: 8, kind: input, shape index: {}]
  %s9 = inlined_call_operand.hbm [shape: f32[2,8], index: 9, kind: output, shape index: {}]
  %s10 = sld [smem:[#allocation0]]
  $region74: #{tpu_custom_call.1} parent=0
    _
  %s12 = ssub.s32 1, %s10
  %s13 = scalar_select 0, %s12, %s10
  %v14 = vstv %s8
  %15 = vst [vmem:[#allocation4] sm:$0x1] %v14
  $region1: #{tpu_custom_call.1} parent=0
    #allocation5 [shape = 'u8[8192]{0}', space=vmem, size = 0x2000, scoped, tag = 'input window, operand 0, single buffered']
    #allocation6 [shape = 's32[1]{0}', space=sflag, size = 0x4, scoped, tag = 'scoped memory for tpu_custom_call.1']
    #allocation7 [shape = 's32[1]{0}', space=sflag, size = 0x4, scoped, tag = 'scoped memory for tpu_custom_call.1']
    #allocation8 [shape = 'u8[8192]{0}', space=vmem, size = 0x2000, scoped, tag = 'input window, operand 1, single buffered']
    #allocation9 [shape = 's32[1]{0}', space=sflag, size = 0x4, scoped, tag = 'scoped memory for tpu_custom_call.1']
    #allocation10 [shape = 'u8[8192]{0}', space=vmem, size = 0x2000, scoped, tag = 'input window, operand 2, single buffered']
    #allocation11 [shape = 'u8[16384]{0}', space=vmem, size = 0x4000, scoped, tag = 'input window, operand 3, single buffered']
    #allocation12 [shape = 's32[1]{0}', space=sflag, size = 0x4, scoped, tag = 'scoped memory for tpu_custom_call.1']
    #allocation13 [shape = 'u8[16384]{0}', space=vmem, size = 0x4000, scoped, tag = 'input window, operand 4, single buffered']
    #allocation14 [shape = 'u8[16384]{0}', space=vmem, size = 0x4000, scoped, tag = 'input window, operand 5, single buffered']
    #allocation15 [shape = 's32[1]{0}', space=sflag, size = 0x4, scoped, tag = 'scoped memory for tpu_custom_call.1']
    #allocation16 [shape = 'u8[1024]{0}', space=vmem, size = 0x400, scoped, tag = 'output window, operand 0, single buffered']
    %16 = vsyncpa [#allocation6], 0
    %17 = vsyncpa [#allocation9], 0
    %18 = vsyncpa [#allocation12], 0
    %19 = vsyncpa [#allocation15], 0
    %20 = vsyncpa [#allocation7], 0
    // Predicated region
    $region2: #{tpu_custom_call.1} parent=1 // pred_check
      _
    $region3: #{tpu_custom_call.1} parent=1 // pred_check_branch
      %22 = sbr.rel (0) target = $region5
    $region4: #{tpu_custom_call.1} parent=1 // pred_region
      %24 = vsyncadd [#allocation6], 0
      %s25 = sshll.u32 %s0, 4
      %s26 = int_to_ptr.hbm [resolvable:$true] %s25
      %s27 = sshll.u32 [#allocation5], 4
      %s28 = int_to_ptr.vmem [resolvable:$true] %s27
      %33 = dma.hbm_to_vmem [thread:$0]  %s26, 256, %s28, [#allocation6], 32, 32, 2
    $region5: #{tpu_custom_call.1} parent=1 // pred_fallthru
      _
    // Predicated region
    $region6: #{tpu_custom_call.1} parent=1 // pred_check
      _
    $region7: #{tpu_custom_call.1} parent=1 // pred_check_branch
      %35 = sbr.rel (0) target = $region9
    $region8: #{tpu_custom_call.1} parent=1 // pred_region
      %37 = vsyncadd [#allocation9], 0
      %s38 = sshll.u32 %s1, 4
      %s39 = int_to_ptr.hbm [resolvable:$true] %s38
      %s40 = sshll.u32 [#allocation8], 4
      %s41 = int_to_ptr.vmem [resolvable:$true] %s40
      %46 = dma.hbm_to_vmem [thread:$0]  %s39, 256, %s41, [#allocation9], 32, 32, 2
    $region9: #{tpu_custom_call.1} parent=1 // pred_fallthru
      _
    // Predicated region
    $region10: #{tpu_custom_call.1} parent=1 // pred_check
      _
    $region11: #{tpu_custom_call.1} parent=1 // pred_check_branch
      %48 = sbr.rel (0) target = $region13
    $region12: #{tpu_custom_call.1} parent=1 // pred_region
      %50 = vsyncadd [#allocation9], 0
      %s51 = sshll.u32 %s2, 4
      %s52 = int_to_ptr.hbm [resolvable:$true] %s51
      %s53 = sshll.u32 [#allocation10], 4
      %s54 = int_to_ptr.vmem [resolvable:$true] %s53
      %59 = dma.hbm_to_vmem [thread:$0]  %s52, 256, %s54, [#allocation9], 32, 32, 2
    $region13: #{tpu_custom_call.1} parent=1 // pred_fallthru
      _
    // Predicated region
    $region14: #{tpu_custom_call.1} parent=1 // pred_check
      _
    $region15: #{tpu_custom_call.1} parent=1 // pred_check_branch
      %61 = sbr.rel (0) target = $region17
    $region16: #{tpu_custom_call.1} parent=1 // pred_region
      %63 = vsyncadd [#allocation12], 0
      %s64 = sshll.u32 %s3, 4
      %s65 = int_to_ptr.hbm [resolvable:$true] %s64
      %s66 = sshll.u32 [#allocation11], 4
      %s67 = int_to_ptr.vmem [resolvable:$true] %s66
      %72 = dma.hbm_to_vmem [thread:$0]  %s65, 512, %s67, [#allocation12], 128, 128, 8
    $region17: #{tpu_custom_call.1} parent=1 // pred_fallthru
      _
    // Predicated region
    $region18: #{tpu_custom_call.1} parent=1 // pred_check
      _
    $region19: #{tpu_custom_call.1} parent=1 // pred_check_branch
      %74 = sbr.rel (0) target = $region21
    $region20: #{tpu_custom_call.1} parent=1 // pred_region
      %76 = vsyncadd [#allocation12], 0
      %s77 = sshll.u32 %s4, 4
      %s78 = int_to_ptr.hbm [resolvable:$true] %s77
      %s79 = sshll.u32 [#allocation13], 4
      %s80 = int_to_ptr.vmem [resolvable:$true] %s79
      %85 = dma.hbm_to_vmem [thread:$0]  %s78, 512, %s80, [#allocation12], 128, 128, 8
    $region21: #{tpu_custom_call.1} parent=1 // pred_fallthru
      _
    // Predicated region
    $region22: #{tpu_custom_call.1} parent=1 // pred_check
      _
    $region23: #{tpu_custom_call.1} parent=1 // pred_check_branch
      %87 = sbr.rel (0) target = $region25
    $region24: #{tpu_custom_call.1} parent=1 // pred_region
      %89 = vsyncadd [#allocation15], 0
      %s90 = sshll.u32 %s5, 4
      %s91 = int_to_ptr.hbm [resolvable:$true] %s90
      %s92 = sshll.u32 [#allocation14], 4
      %s93 = int_to_ptr.vmem [resolvable:$true] %s92
      %98 = dma.hbm_to_vmem [thread:$0]  %s91, 512, %s93, [#allocation15], 128, 128, 8
    $region25: #{tpu_custom_call.1} parent=1 // pred_fallthru
      _
    // Predicated region
    $region26: #{tpu_custom_call.1} parent=1 // pred_check
      _
    $region27: #{tpu_custom_call.1} parent=1 // pred_check_branch
      %100 = sbr.rel (0) target = $region29
    $region28: #{tpu_custom_call.1} parent=1 // pred_region
      _
    $region29: #{tpu_custom_call.1} parent=1 // pred_fallthru
      _
    // Predicated region
    $region30: #{tpu_custom_call.1} parent=1 // pred_check
      _
    $region31: #{tpu_custom_call.1} parent=1 // pred_check_branch
      %102 = sbr.rel (0) target = $region33
    $region32: #{tpu_custom_call.1} parent=1 // pred_region
      _
    $region33: #{tpu_custom_call.1} parent=1 // pred_fallthru
      _
    // Predicated region
    $region34: #{tpu_custom_call.1} parent=1 // pred_check
      _
    $region35: #{tpu_custom_call.1} parent=1 // pred_check_branch
      %104 = sbr.rel (0) target = $region37
    $region36: #{tpu_custom_call.1} parent=1 // pred_region
      _
    $region37: #{tpu_custom_call.1} parent=1 // pred_fallthru
      _
    // Predicated region
    $region38: #{tpu_custom_call.1} parent=1 // pred_check
      _
    $region39: #{tpu_custom_call.1} parent=1 // pred_check_branch
      %106 = sbr.rel (0) target = $region41
    $region40: #{tpu_custom_call.1} parent=1 // pred_region
      %108 = dma.done [#allocation6], 256
    $region41: #{tpu_custom_call.1} parent=1 // pred_fallthru
      _
    // Predicated region
    $region42: #{tpu_custom_call.1} parent=1 // pred_check
      _
    $region43: #{tpu_custom_call.1} parent=1 // pred_check_branch
      %110 = sbr.rel (0) target = $region45
    $region44: #{tpu_custom_call.1} parent=1 // pred_region
      %112 = dma.done [#allocation9], 256
    $region45: #{tpu_custom_call.1} parent=1 // pred_fallthru
      _
    // Predicated region
    $region46: #{tpu_custom_call.1} parent=1 // pred_check
      _
    $region47: #{tpu_custom_call.1} parent=1 // pred_check_branch
      %114 = sbr.rel (0) target = $region49
    $region48: #{tpu_custom_call.1} parent=1 // pred_region
      %116 = dma.done [#allocation9], 256
    $region49: #{tpu_custom_call.1} parent=1 // pred_fallthru
      _
    // Predicated region
    $region50: #{tpu_custom_call.1} parent=1 // pred_check
      _
    $region51: #{tpu_custom_call.1} parent=1 // pred_check_branch
      %118 = sbr.rel (0) target = $region53
    $region52: #{tpu_custom_call.1} parent=1 // pred_region
      %120 = dma.done [#allocation12], 512
    $region53: #{tpu_custom_call.1} parent=1 // pred_fallthru
      _
    // Predicated region
    $region54: #{tpu_custom_call.1} parent=1 // pred_check
      _
    $region55: #{tpu_custom_call.1} parent=1 // pred_check_branch
      %122 = sbr.rel (0) target = $region57
    $region56: #{tpu_custom_call.1} parent=1 // pred_region
      %124 = dma.done [#allocation12], 512
    $region57: #{tpu_custom_call.1} parent=1 // pred_fallthru
      _
    // Predicated region
    $region58: #{tpu_custom_call.1} parent=1 // pred_check
      _
    $region59: #{tpu_custom_call.1} parent=1 // pred_check_branch
      %126 = sbr.rel (0) target = $region61
    $region60: #{tpu_custom_call.1} parent=1 // pred_region
      %128 = dma.done [#allocation15], 512
    $region61: #{tpu_custom_call.1} parent=1 // pred_fallthru
      _
    %p129 = scmp.eq.s32.totalorder 0, 0
    // Predicated region
    $region62: #{tpu_custom_call.1} parent=1 // pred_check
      %p130 = pneg %p129
    $region63: #{tpu_custom_call.1} parent=1 // pred_check_branch
      %132 = sbr.rel (%p130) target = $region65
    $region64: #{tpu_custom_call.1} parent=1 // pred_region
      %vm133 = vcmask 254976
      %134 = vst.msk [vmem:[#allocation2] sm:$0x3] %vm133, 0.0
    $region65: #{tpu_custom_call.1} parent=1 // pred_fallthru
      _
    %v135 = vld [vmem:[#allocation11] sm:$0xff]
    %v136 = vld [vmem:[#allocation11 + $0x8] sm:$0xff]
    %v137 = vld [vmem:[#allocation11 + $0x10] sm:$0xff]
    %v138 = vld [vmem:[#allocation11 + $0x18] sm:$0xff]
    %v139 = vld [vmem:[#allocation13] sm:$0xff]
    %v140 = vld [vmem:[#allocation13 + $0x8] sm:$0xff]
    %v141 = vld [vmem:[#allocation13 + $0x10] sm:$0xff]
    %v142 = vld [vmem:[#allocation13 + $0x18] sm:$0xff]
    %v143 = vld [vmem:[#allocation14] sm:$0xff]
    %v144 = vld [vmem:[#allocation14 + $0x8] sm:$0xff]
    %v145 = vld [vmem:[#allocation14 + $0x10] sm:$0xff]
    %v146 = vld [vmem:[#allocation14 + $0x18] sm:$0xff]
    %v147 = vld [vmem:[%s6] sm:$0x1]
    %v149 = vperm.slane %v147, 0
    %v151 = vld [vmem:[#allocation2] sm:$0x3]
    %vm152 = vcmask 261120
    %v154 = vsel %vm152, %v151, 0
    %156 = vmatpush.msra.mxu0 0.0
    %157 = vmatpush.msra.mxu0 0.0
    %158 = vmatpush.msra.mxu0 0.0
    %159 = vmatpush.msra.mxu0 0.0
    %160 = vmatpush.msra.mxu0 0.0
    %161 = vmatpush.msra.mxu0 0.0
    %162 = vmatpush.msra.mxu0 0.0
    %163 = vmatpush.msra.mxu0 0.0
    %164 = vmatpush.msra.mxu0 0.0
    %165 = vmatpush.msra.mxu0 0.0
    %166 = vmatpush.msra.mxu0 0.0
    %167 = vmatpush.msra.mxu0 0.0
    %168 = vmatpush.msra.mxu0 %v138
    %169 = vmatpush.msra.mxu0 %v137
    %170 = vmatpush.msra.mxu0 %v136
    %171 = vmatpush.msra.mxu0 %v135
    %172 = vmatmul.f32.gmra.mxu0 %v154
    %v173 = vpop.f32.mrf.mxu0
    %v174 = vadd.f32 0.0, %v173
    %175 = vdwg.mxu0
    %176 = vmatpush.msra.mxu0 0.0
    %177 = vmatpush.msra.mxu0 0.0
    %178 = vmatpush.msra.mxu0 0.0
    %179 = vmatpush.msra.mxu0 0.0
    %180 = vmatpush.msra.mxu0 0.0
    %181 = vmatpush.msra.mxu0 0.0
    %182 = vmatpush.msra.mxu0 0.0
    %183 = vmatpush.msra.mxu0 0.0
    %184 = vmatpush.msra.mxu0 0.0
    %185 = vmatpush.msra.mxu0 0.0
    %186 = vmatpush.msra.mxu0 0.0
    %187 = vmatpush.msra.mxu0 0.0
    %188 = vmatpush.msra.mxu0 %v142
    %189 = vmatpush.msra.mxu0 %v141
    %190 = vmatpush.msra.mxu0 %v140
    %191 = vmatpush.msra.mxu0 %v139
    %192 = vmatmul.f32.gmra.mxu0 %v154
    %v193 = vpop.f32.mrf.mxu0
    %v194 = vadd.f32 0.0, %v193
    %195 = vdwg.mxu0
    %v196 = vld [vmem:[#allocation5] sm:$0x3]
    %v197 = vadd.f32 %v196, %v174
    %v198 = vxor.u32 %v197, 2147483648
    %v199 = vmul.f32 %v198, 1.442695
    %v200 = vpow.pop %v199
    %v201 = vadd.f32 %v200, 1.0
    %v202 = vrcp.pop %v201
    %v203 = vmul.f32 %v201, %v202
    %v204 = vsub.f32 1.0, %v203
    %v205 = vmul.f32 %v202, %v204
    %v206 = vadd.f32 %v202, %v205
    %vm207 = vweird.f32 %v201
    %vm208 = vweird.f32 %v202
    %vm209 = vmor %vm207, %vm208
    %v210 = vsel %vm209, %v202, %v206
    %v211 = vand.u32 2147483647, %v201
    %vm212 = vcmp.eq.f32.partialorder %v211, 8.507059e+37
    %v213 = vand.u32 %v201, 2147483648
    %v214 = vor.u32 1.1754944e-38, %v213
    %v215 = vsel %vm212, %v214, %v210
    %v216 = vmul.f32 1.0, %v215
    %v217 = vld [vmem:[#allocation8] sm:$0x3]
    %v218 = vadd.f32 %v217, %v194
    %v219 = vxor.u32 %v218, 2147483648
    %v220 = vmul.f32 %v219, 1.442695
    %v221 = vpow.pop %v220
    %v222 = vadd.f32 %v221, 1.0
    %v223 = vrcp.pop %v222
    %v224 = vmul.f32 %v222, %v223
    %v225 = vsub.f32 1.0, %v224
    %v226 = vmul.f32 %v223, %v225
    %v227 = vadd.f32 %v223, %v226
    %vm228 = vweird.f32 %v222
    %vm229 = vweird.f32 %v223
    %vm230 = vmor %vm228, %vm229
    %v231 = vsel %vm230, %v223, %v227
    %v232 = vand.u32 2147483647, %v222
    %vm233 = vcmp.eq.f32.partialorder %v232, 8.507059e+37
    %v234 = vand.u32 %v222, 2147483648
    %v235 = vor.u32 1.1754944e-38, %v234
    %v236 = vsel %vm233, %v235, %v231
    %v237 = vmul.f32 1.0, %v236
    %v238 = vld [vmem:[#allocation10] sm:$0x3]
    %239 = vmatpush.msra.mxu0 0.0
    %240 = vmatpush.msra.mxu0 0.0
    %241 = vmatpush.msra.mxu0 0.0
    %242 = vmatpush.msra.mxu0 0.0
    %243 = vmatpush.msra.mxu0 0.0
    %244 = vmatpush.msra.mxu0 0.0
    %245 = vmatpush.msra.mxu0 0.0
    %246 = vmatpush.msra.mxu0 0.0
    %247 = vmatpush.msra.mxu0 0.0
    %248 = vmatpush.msra.mxu0 0.0
    %249 = vmatpush.msra.mxu0 0.0
    %250 = vmatpush.msra.mxu0 0.0
    %251 = vmatpush.msra.mxu0 %v146
    %252 = vmatpush.msra.mxu0 %v145
    %253 = vmatpush.msra.mxu0 %v144
    %254 = vmatpush.msra.mxu0 %v143
    %255 = vmatmul.f32.gmra.mxu0 %v154
    %v256 = vpop.f32.mrf.mxu0
    %v257 = vadd.f32 %v149, %v256
    %258 = vdwg.mxu0
    %v259 = vmul.f32 %v216, %v257
    %v260 = vadd.f32 %v238, %v259
    %v261 = vtanh.pop %v260
    %v262 = vsub.f32 1.0, %v237
    %v263 = vmul.f32 %v262, %v261
    %v264 = vmul.f32 %v237, %v151
    %v265 = vadd.f32 %v263, %v264
    %vm266 = vcmask 254976
    %267 = vst.msk [vmem:[#allocation3] sm:$0x3] %vm266, %v265
    %v269 = vsel %vm152, %v265, 0
    %271 = vmatpush.msra.mxu0 0.0
    %272 = vmatpush.msra.mxu0 0.0
    %273 = vmatpush.msra.mxu0 0.0
    %274 = vmatpush.msra.mxu0 0.0
    %275 = vmatpush.msra.mxu0 0.0
    %276 = vmatpush.msra.mxu0 0.0
    %277 = vmatpush.msra.mxu0 0.0
    %278 = vmatpush.msra.mxu0 0.0
    %279 = vmatpush.msra.mxu0 0.0
    %280 = vmatpush.msra.mxu0 0.0
    %281 = vmatpush.msra.mxu0 0.0
    %282 = vmatpush.msra.mxu0 0.0
    %283 = vmatpush.msra.mxu0 %v138
    %284 = vmatpush.msra.mxu0 %v137
    %285 = vmatpush.msra.mxu0 %v136
    %286 = vmatpush.msra.mxu0 %v135
    %287 = vmatmul.f32.gmra.mxu0 %v269
    %v288 = vpop.f32.mrf.mxu0
    %v289 = vadd.f32 0.0, %v288
    %290 = vdwg.mxu0
    %291 = vmatpush.msra.mxu0 0.0
    %292 = vmatpush.msra.mxu0 0.0
    %293 = vmatpush.msra.mxu0 0.0
    %294 = vmatpush.msra.mxu0 0.0
    %295 = vmatpush.msra.mxu0 0.0
    %296 = vmatpush.msra.mxu0 0.0
    %297 = vmatpush.msra.mxu0 0.0
    %298 = vmatpush.msra.mxu0 0.0
    %299 = vmatpush.msra.mxu0 0.0
    %300 = vmatpush.msra.mxu0 0.0
    %301 = vmatpush.msra.mxu0 0.0
    %302 = vmatpush.msra.mxu0 0.0
    %303 = vmatpush.msra.mxu0 %v142
    %304 = vmatpush.msra.mxu0 %v141
    %305 = vmatpush.msra.mxu0 %v140
    %306 = vmatpush.msra.mxu0 %v139
    %307 = vmatmul.f32.gmra.mxu0 %v269
    %v308 = vpop.f32.mrf.mxu0
    %v309 = vadd.f32 0.0, %v308
    %310 = vdwg.mxu0
    %s311 = scalar_lea.vmem [#allocation5], 2
    %v312 = vld [vmem:[%s311] sm:$0x3]
    %v313 = vadd.f32 %v312, %v289
    %v314 = vxor.u32 %v313, 2147483648
    %v315 = vmul.f32 %v314, 1.442695
    %v316 = vpow.pop %v315
    %v317 = vadd.f32 %v316, 1.0
    %v318 = vrcp.pop %v317
    %v319 = vmul.f32 %v317, %v318
    %v320 = vsub.f32 1.0, %v319
    %v321 = vmul.f32 %v318, %v320
    %v322 = vadd.f32 %v318, %v321
    %vm323 = vweird.f32 %v317
    %vm324 = vweird.f32 %v318
    %vm325 = vmor %vm323, %vm324
    %v326 = vsel %vm325, %v318, %v322
    %v327 = vand.u32 2147483647, %v317
    %vm328 = vcmp.eq.f32.partialorder %v327, 8.507059e+37
    %v329 = vand.u32 %v317, 2147483648
    %v330 = vor.u32 1.1754944e-38, %v329
    %v331 = vsel %vm328, %v330, %v326
    %v332 = vmul.f32 1.0, %v331
    %s333 = scalar_lea.vmem [#allocation8], 2
    %v334 = vld [vmem:[%s333] sm:$0x3]
    %v335 = vadd.f32 %v334, %v309
    %v336 = vxor.u32 %v335, 2147483648
    %v337 = vmul.f32 %v336, 1.442695
    %v338 = vpow.pop %v337
    %v339 = vadd.f32 %v338, 1.0
    %v340 = vrcp.pop %v339
    %v341 = vmul.f32 %v339, %v340
    %v342 = vsub.f32 1.0, %v341
    %v343 = vmul.f32 %v340, %v342
    %v344 = vadd.f32 %v340, %v343
    %vm345 = vweird.f32 %v339
    %vm346 = vweird.f32 %v340
    %vm347 = vmor %vm345, %vm346
    %v348 = vsel %vm347, %v340, %v344
    %v349 = vand.u32 2147483647, %v339
    %vm350 = vcmp.eq.f32.partialorder %v349, 8.507059e+37
    %v351 = vand.u32 %v339, 2147483648
    %v352 = vor.u32 1.1754944e-38, %v351
    %v353 = vsel %vm350, %v352, %v348
    %v354 = vmul.f32 1.0, %v353
    %s355 = scalar_lea.vmem [#allocation10], 2
    %v356 = vld [vmem:[%s355] sm:$0x3]
    %357 = vmatpush.msra.mxu0 0.0
    %358 = vmatpush.msra.mxu0 0.0
    %359 = vmatpush.msra.mxu0 0.0
    %360 = vmatpush.msra.mxu0 0.0
    %361 = vmatpush.msra.mxu0 0.0
    %362 = vmatpush.msra.mxu0 0.0
    %363 = vmatpush.msra.mxu0 0.0
    %364 = vmatpush.msra.mxu0 0.0
    %365 = vmatpush.msra.mxu0 0.0
    %366 = vmatpush.msra.mxu0 0.0
    %367 = vmatpush.msra.mxu0 0.0
    %368 = vmatpush.msra.mxu0 0.0
    %369 = vmatpush.msra.mxu0 %v146
    %370 = vmatpush.msra.mxu0 %v145
    %371 = vmatpush.msra.mxu0 %v144
    %372 = vmatpush.msra.mxu0 %v143
    %373 = vmatmul.f32.gmra.mxu0 %v269
    %v374 = vpop.f32.mrf.mxu0
    %v375 = vadd.f32 %v149, %v374
    %376 = vdwg.mxu0
    %v377 = vmul.f32 %v332, %v375
    %v378 = vadd.f32 %v356, %v377
    %v379 = vtanh.pop %v378
    %v380 = vsub.f32 1.0, %v354
    %v381 = vmul.f32 %v380, %v379
    %v382 = vmul.f32 %v354, %v265
    %v383 = vadd.f32 %v381, %v382
    %s384 = scalar_lea.vmem [#allocation3], 2
    %385 = vst.msk [vmem:[%s384] sm:$0x3] %vm266, %v383
    %v387 = vsel %vm152, %v383, 0
    %389 = vmatpush.msra.mxu0 0.0
    %390 = vmatpush.msra.mxu0 0.0
    %391 = vmatpush.msra.mxu0 0.0
    %392 = vmatpush.msra.mxu0 0.0
    %393 = vmatpush.msra.mxu0 0.0
    %394 = vmatpush.msra.mxu0 0.0
    %395 = vmatpush.msra.mxu0 0.0
    %396 = vmatpush.msra.mxu0 0.0
    %397 = vmatpush.msra.mxu0 0.0
    %398 = vmatpush.msra.mxu0 0.0
    %399 = vmatpush.msra.mxu0 0.0
    %400 = vmatpush.msra.mxu0 0.0
    %401 = vmatpush.msra.mxu0 %v138
    %402 = vmatpush.msra.mxu0 %v137
    %403 = vmatpush.msra.mxu0 %v136
    %404 = vmatpush.msra.mxu0 %v135
    %405 = vmatmul.f32.gmra.mxu0 %v387
    %v406 = vpop.f32.mrf.mxu0
    %v407 = vadd.f32 0.0, %v406
    %408 = vdwg.mxu0
    %409 = vmatpush.msra.mxu0 0.0
    %410 = vmatpush.msra.mxu0 0.0
    %411 = vmatpush.msra.mxu0 0.0
    %412 = vmatpush.msra.mxu0 0.0
    %413 = vmatpush.msra.mxu0 0.0
    %414 = vmatpush.msra.mxu0 0.0
    %415 = vmatpush.msra.mxu0 0.0
    %416 = vmatpush.msra.mxu0 0.0
    %417 = vmatpush.msra.mxu0 0.0
    %418 = vmatpush.msra.mxu0 0.0
    %419 = vmatpush.msra.mxu0 0.0
    %420 = vmatpush.msra.mxu0 0.0
    %421 = vmatpush.msra.mxu0 %v142
    %422 = vmatpush.msra.mxu0 %v141
    %423 = vmatpush.msra.mxu0 %v140
    %424 = vmatpush.msra.mxu0 %v139
    %425 = vmatmul.f32.gmra.mxu0 %v387
    %v426 = vpop.f32.mrf.mxu0
    %v427 = vadd.f32 0.0, %v426
    %428 = vdwg.mxu0
    %s429 = scalar_lea.vmem [#allocation5], 4
    %v430 = vld [vmem:[%s429] sm:$0x3]
    %v431 = vadd.f32 %v430, %v407
    %v432 = vxor.u32 %v431, 2147483648
    %v433 = vmul.f32 %v432, 1.442695
    %v434 = vpow.pop %v433
    %v435 = vadd.f32 %v434, 1.0
    %v436 = vrcp.pop %v435
    %v437 = vmul.f32 %v435, %v436
    %v438 = vsub.f32 1.0, %v437
    %v439 = vmul.f32 %v436, %v438
    %v440 = vadd.f32 %v436, %v439
    %vm441 = vweird.f32 %v435
    %vm442 = vweird.f32 %v436
    %vm443 = vmor %vm441, %vm442
    %v444 = vsel %vm443, %v436, %v440
    %v445 = vand.u32 2147483647, %v435
    %vm446 = vcmp.eq.f32.partialorder %v445, 8.507059e+37
    %v447 = vand.u32 %v435, 2147483648
    %v448 = vor.u32 1.1754944e-38, %v447
    %v449 = vsel %vm446, %v448, %v444
    %v450 = vmul.f32 1.0, %v449
    %s451 = scalar_lea.vmem [#allocation8], 4
    %v452 = vld [vmem:[%s451] sm:$0x3]
    %v453 = vadd.f32 %v452, %v427
    %v454 = vxor.u32 %v453, 2147483648
    %v455 = vmul.f32 %v454, 1.442695
    %v456 = vpow.pop %v455
    %v457 = vadd.f32 %v456, 1.0
    %v458 = vrcp.pop %v457
    %v459 = vmul.f32 %v457, %v458
    %v460 = vsub.f32 1.0, %v459
    %v461 = vmul.f32 %v458, %v460
    %v462 = vadd.f32 %v458, %v461
    %vm463 = vweird.f32 %v457
    %vm464 = vweird.f32 %v458
    %vm465 = vmor %vm463, %vm464
    %v466 = vsel %vm465, %v458, %v462
    %v467 = vand.u32 2147483647, %v457
    %vm468 = vcmp.eq.f32.partialorder %v467, 8.507059e+37
    %v469 = vand.u32 %v457, 2147483648
    %v470 = vor.u32 1.1754944e-38, %v469
    %v471 = vsel %vm468, %v470, %v466
    %v472 = vmul.f32 1.0, %v471
    %s473 = scalar_lea.vmem [#allocation10], 4
    %v474 = vld [vmem:[%s473] sm:$0x3]
    %475 = vmatpush.msra.mxu0 0.0
    %476 = vmatpush.msra.mxu0 0.0
    %477 = vmatpush.msra.mxu0 0.0
    %478 = vmatpush.msra.mxu0 0.0
    %479 = vmatpush.msra.mxu0 0.0
    %480 = vmatpush.msra.mxu0 0.0
    %481 = vmatpush.msra.mxu0 0.0
    %482 = vmatpush.msra.mxu0 0.0
    %483 = vmatpush.msra.mxu0 0.0
    %484 = vmatpush.msra.mxu0 0.0
    %485 = vmatpush.msra.mxu0 0.0
    %486 = vmatpush.msra.mxu0 0.0
    %487 = vmatpush.msra.mxu0 %v146
    %488 = vmatpush.msra.mxu0 %v145
    %489 = vmatpush.msra.mxu0 %v144
    %490 = vmatpush.msra.mxu0 %v143
    %491 = vmatmul.f32.gmra.mxu0 %v387
    %v492 = vpop.f32.mrf.mxu0
    %v493 = vadd.f32 %v149, %v492
    %494 = vdwg.mxu0
    %v495 = vmul.f32 %v450, %v493
    %v496 = vadd.f32 %v474, %v495
    %v497 = vtanh.pop %v496
    %v498 = vsub.f32 1.0, %v472
    %v499 = vmul.f32 %v498, %v497
    %v500 = vmul.f32 %v472, %v383
    %v501 = vadd.f32 %v499, %v500
    %s502 = scalar_lea.vmem [#allocation3], 4
    %503 = vst.msk [vmem:[%s502] sm:$0x3] %vm266, %v501
    %v505 = vsel %vm152, %v501, 0
    %507 = vmatpush.msra.mxu0 0.0
    %508 = vmatpush.msra.mxu0 0.0
    %509 = vmatpush.msra.mxu0 0.0
    %510 = vmatpush.msra.mxu0 0.0
    %511 = vmatpush.msra.mxu0 0.0
    %512 = vmatpush.msra.mxu0 0.0
    %513 = vmatpush.msra.mxu0 0.0
    %514 = vmatpush.msra.mxu0 0.0
    %515 = vmatpush.msra.mxu0 0.0
    %516 = vmatpush.msra.mxu0 0.0
    %517 = vmatpush.msra.mxu0 0.0
    %518 = vmatpush.msra.mxu0 0.0
    %519 = vmatpush.msra.mxu0 %v138
    %520 = vmatpush.msra.mxu0 %v137
    %521 = vmatpush.msra.mxu0 %v136
    %522 = vmatpush.msra.mxu0 %v135
    %523 = vmatmul.f32.gmra.mxu0 %v505
    %v524 = vpop.f32.mrf.mxu0
    %v525 = vadd.f32 0.0, %v524
    %526 = vdwg.mxu0
    %527 = vmatpush.msra.mxu0 0.0
    %528 = vmatpush.msra.mxu0 0.0
    %529 = vmatpush.msra.mxu0 0.0
    %530 = vmatpush.msra.mxu0 0.0
    %531 = vmatpush.msra.mxu0 0.0
    %532 = vmatpush.msra.mxu0 0.0
    %533 = vmatpush.msra.mxu0 0.0
    %534 = vmatpush.msra.mxu0 0.0
    %535 = vmatpush.msra.mxu0 0.0
    %536 = vmatpush.msra.mxu0 0.0
    %537 = vmatpush.msra.mxu0 0.0
    %538 = vmatpush.msra.mxu0 0.0
    %539 = vmatpush.msra.mxu0 %v142
    %540 = vmatpush.msra.mxu0 %v141
    %541 = vmatpush.msra.mxu0 %v140
    %542 = vmatpush.msra.mxu0 %v139
    %543 = vmatmul.f32.gmra.mxu0 %v505
    %v544 = vpop.f32.mrf.mxu0
    %v545 = vadd.f32 0.0, %v544
    %546 = vdwg.mxu0
    %s547 = scalar_lea.vmem [#allocation5], 6
    %v548 = vld [vmem:[%s547] sm:$0x3]
    %v549 = vadd.f32 %v548, %v525
    %v550 = vxor.u32 %v549, 2147483648
    %v551 = vmul.f32 %v550, 1.442695
    %v552 = vpow.pop %v551
    %v553 = vadd.f32 %v552, 1.0
    %v554 = vrcp.pop %v553
    %v555 = vmul.f32 %v553, %v554
    %v556 = vsub.f32 1.0, %v555
    %v557 = vmul.f32 %v554, %v556
    %v558 = vadd.f32 %v554, %v557
    %vm559 = vweird.f32 %v553
    %vm560 = vweird.f32 %v554
    %vm561 = vmor %vm559, %vm560
    %v562 = vsel %vm561, %v554, %v558
    %v563 = vand.u32 2147483647, %v553
    %vm564 = vcmp.eq.f32.partialorder %v563, 8.507059e+37
    %v565 = vand.u32 %v553, 2147483648
    %v566 = vor.u32 1.1754944e-38, %v565
    %v567 = vsel %vm564, %v566, %v562
    %v568 = vmul.f32 1.0, %v567
    %s569 = scalar_lea.vmem [#allocation8], 6
    %v570 = vld [vmem:[%s569] sm:$0x3]
    %v571 = vadd.f32 %v570, %v545
    %v572 = vxor.u32 %v571, 2147483648
    %v573 = vmul.f32 %v572, 1.442695
    %v574 = vpow.pop %v573
    %v575 = vadd.f32 %v574, 1.0
    %v576 = vrcp.pop %v575
    %v577 = vmul.f32 %v575, %v576
    %v578 = vsub.f32 1.0, %v577
    %v579 = vmul.f32 %v576, %v578
    %v580 = vadd.f32 %v576, %v579
    %vm581 = vweird.f32 %v575
    %vm582 = vweird.f32 %v576
    %vm583 = vmor %vm581, %vm582
    %v584 = vsel %vm583, %v576, %v580
    %v585 = vand.u32 2147483647, %v575
    %vm586 = vcmp.eq.f32.partialorder %v585, 8.507059e+37
    %v587 = vand.u32 %v575, 2147483648
    %v588 = vor.u32 1.1754944e-38, %v587
    %v589 = vsel %vm586, %v588, %v584
    %v590 = vmul.f32 1.0, %v589
    %s591 = scalar_lea.vmem [#allocation10], 6
    %v592 = vld [vmem:[%s591] sm:$0x3]
    %593 = vmatpush.msra.mxu0 0.0
    %594 = vmatpush.msra.mxu0 0.0
    %595 = vmatpush.msra.mxu0 0.0
    %596 = vmatpush.msra.mxu0 0.0
    %597 = vmatpush.msra.mxu0 0.0
    %598 = vmatpush.msra.mxu0 0.0
    %599 = vmatpush.msra.mxu0 0.0
    %600 = vmatpush.msra.mxu0 0.0
    %601 = vmatpush.msra.mxu0 0.0
    %602 = vmatpush.msra.mxu0 0.0
    %603 = vmatpush.msra.mxu0 0.0
    %604 = vmatpush.msra.mxu0 0.0
    %605 = vmatpush.msra.mxu0 %v146
    %606 = vmatpush.msra.mxu0 %v145
    %607 = vmatpush.msra.mxu0 %v144
    %608 = vmatpush.msra.mxu0 %v143
    %609 = vmatmul.f32.gmra.mxu0 %v505
    %v610 = vpop.f32.mrf.mxu0
    %v611 = vadd.f32 %v149, %v610
    %612 = vdwg.mxu0
    %v613 = vmul.f32 %v568, %v611
    %v614 = vadd.f32 %v592, %v613
    %v615 = vtanh.pop %v614
    %v616 = vsub.f32 1.0, %v590
    %v617 = vmul.f32 %v616, %v615
    %v618 = vmul.f32 %v590, %v501
    %v619 = vadd.f32 %v617, %v618
    %s620 = scalar_lea.vmem [#allocation3], 6
    %621 = vst.msk [vmem:[%s620] sm:$0x3] %vm266, %v619
    %v623 = vsel %vm152, %v619, 0
    %625 = vmatpush.msra.mxu0 0.0
    %626 = vmatpush.msra.mxu0 0.0
    %627 = vmatpush.msra.mxu0 0.0
    %628 = vmatpush.msra.mxu0 0.0
    %629 = vmatpush.msra.mxu0 0.0
    %630 = vmatpush.msra.mxu0 0.0
    %631 = vmatpush.msra.mxu0 0.0
    %632 = vmatpush.msra.mxu0 0.0
    %633 = vmatpush.msra.mxu0 0.0
    %634 = vmatpush.msra.mxu0 0.0
    %635 = vmatpush.msra.mxu0 0.0
    %636 = vmatpush.msra.mxu0 0.0
    %637 = vmatpush.msra.mxu0 %v138
    %638 = vmatpush.msra.mxu0 %v137
    %639 = vmatpush.msra.mxu0 %v136
    %640 = vmatpush.msra.mxu0 %v135
    %641 = vmatmul.f32.gmra.mxu0 %v623
    %v642 = vpop.f32.mrf.mxu0
    %v643 = vadd.f32 0.0, %v642
    %644 = vdwg.mxu0
    %645 = vmatpush.msra.mxu0 0.0
    %646 = vmatpush.msra.mxu0 0.0
    %647 = vmatpush.msra.mxu0 0.0
    %648 = vmatpush.msra.mxu0 0.0
    %649 = vmatpush.msra.mxu0 0.0
    %650 = vmatpush.msra.mxu0 0.0
    %651 = vmatpush.msra.mxu0 0.0
    %652 = vmatpush.msra.mxu0 0.0
    %653 = vmatpush.msra.mxu0 0.0
    %654 = vmatpush.msra.mxu0 0.0
    %655 = vmatpush.msra.mxu0 0.0
    %656 = vmatpush.msra.mxu0 0.0
    %657 = vmatpush.msra.mxu0 %v142
    %658 = vmatpush.msra.mxu0 %v141
    %659 = vmatpush.msra.mxu0 %v140
    %660 = vmatpush.msra.mxu0 %v139
    %661 = vmatmul.f32.gmra.mxu0 %v623
    %v662 = vpop.f32.mrf.mxu0
    %v663 = vadd.f32 0.0, %v662
    %664 = vdwg.mxu0
    %s665 = scalar_lea.vmem [#allocation5], 8
    %v666 = vld [vmem:[%s665] sm:$0x3]
    %v667 = vadd.f32 %v666, %v643
    %v668 = vxor.u32 %v667, 2147483648
    %v669 = vmul.f32 %v668, 1.442695
    %v670 = vpow.pop %v669
    %v671 = vadd.f32 %v670, 1.0
    %v672 = vrcp.pop %v671
    %v673 = vmul.f32 %v671, %v672
    %v674 = vsub.f32 1.0, %v673
    %v675 = vmul.f32 %v672, %v674
    %v676 = vadd.f32 %v672, %v675
    %vm677 = vweird.f32 %v671
    %vm678 = vweird.f32 %v672
    %vm679 = vmor %vm677, %vm678
    %v680 = vsel %vm679, %v672, %v676
    %v681 = vand.u32 2147483647, %v671
    %vm682 = vcmp.eq.f32.partialorder %v681, 8.507059e+37
    %v683 = vand.u32 %v671, 2147483648
    %v684 = vor.u32 1.1754944e-38, %v683
    %v685 = vsel %vm682, %v684, %v680
    %v686 = vmul.f32 1.0, %v685
    %s687 = scalar_lea.vmem [#allocation8], 8
    %v688 = vld [vmem:[%s687] sm:$0x3]
    %v689 = vadd.f32 %v688, %v663
    %v690 = vxor.u32 %v689, 2147483648
    %v691 = vmul.f32 %v690, 1.442695
    %v692 = vpow.pop %v691
    %v693 = vadd.f32 %v692, 1.0
    %v694 = vrcp.pop %v693
    %v695 = vmul.f32 %v693, %v694
    %v696 = vsub.f32 1.0, %v695
    %v697 = vmul.f32 %v694, %v696
    %v698 = vadd.f32 %v694, %v697
    %vm699 = vweird.f32 %v693
    %vm700 = vweird.f32 %v694
    %vm701 = vmor %vm699, %vm700
    %v702 = vsel %vm701, %v694, %v698
    %v703 = vand.u32 2147483647, %v693
    %vm704 = vcmp.eq.f32.partialorder %v703, 8.507059e+37
    %v705 = vand.u32 %v693, 2147483648
    %v706 = vor.u32 1.1754944e-38, %v705
    %v707 = vsel %vm704, %v706, %v702
    %v708 = vmul.f32 1.0, %v707
    %s709 = scalar_lea.vmem [#allocation10], 8
    %v710 = vld [vmem:[%s709] sm:$0x3]
    %711 = vmatpush.msra.mxu0 0.0
    %712 = vmatpush.msra.mxu0 0.0
    %713 = vmatpush.msra.mxu0 0.0
    %714 = vmatpush.msra.mxu0 0.0
    %715 = vmatpush.msra.mxu0 0.0
    %716 = vmatpush.msra.mxu0 0.0
    %717 = vmatpush.msra.mxu0 0.0
    %718 = vmatpush.msra.mxu0 0.0
    %719 = vmatpush.msra.mxu0 0.0
    %720 = vmatpush.msra.mxu0 0.0
    %721 = vmatpush.msra.mxu0 0.0
    %722 = vmatpush.msra.mxu0 0.0
    %723 = vmatpush.msra.mxu0 %v146
    %724 = vmatpush.msra.mxu0 %v145
    %725 = vmatpush.msra.mxu0 %v144
    %726 = vmatpush.msra.mxu0 %v143
    %727 = vmatmul.f32.gmra.mxu0 %v623
    %v728 = vpop.f32.mrf.mxu0
    %v729 = vadd.f32 %v149, %v728
    %730 = vdwg.mxu0
    %v731 = vmul.f32 %v686, %v729
    %v732 = vadd.f32 %v710, %v731
    %v733 = vtanh.pop %v732
    %v734 = vsub.f32 1.0, %v708
    %v735 = vmul.f32 %v734, %v733
    %v736 = vmul.f32 %v708, %v619
    %v737 = vadd.f32 %v735, %v736
    %s738 = scalar_lea.vmem [#allocation3], 8
    %739 = vst.msk [vmem:[%s738] sm:$0x3] %vm266, %v737
    %v741 = vsel %vm152, %v737, 0
    %743 = vmatpush.msra.mxu0 0.0
    %744 = vmatpush.msra.mxu0 0.0
    %745 = vmatpush.msra.mxu0 0.0
    %746 = vmatpush.msra.mxu0 0.0
    %747 = vmatpush.msra.mxu0 0.0
    %748 = vmatpush.msra.mxu0 0.0
    %749 = vmatpush.msra.mxu0 0.0
    %750 = vmatpush.msra.mxu0 0.0
    %751 = vmatpush.msra.mxu0 0.0
    %752 = vmatpush.msra.mxu0 0.0
    %753 = vmatpush.msra.mxu0 0.0
    %754 = vmatpush.msra.mxu0 0.0
    %755 = vmatpush.msra.mxu0 %v138
    %756 = vmatpush.msra.mxu0 %v137
    %757 = vmatpush.msra.mxu0 %v136
    %758 = vmatpush.msra.mxu0 %v135
    %759 = vmatmul.f32.gmra.mxu0 %v741
    %v760 = vpop.f32.mrf.mxu0
    %v761 = vadd.f32 0.0, %v760
    %762 = vdwg.mxu0
    %763 = vmatpush.msra.mxu0 0.0
    %764 = vmatpush.msra.mxu0 0.0
    %765 = vmatpush.msra.mxu0 0.0
    %766 = vmatpush.msra.mxu0 0.0
    %767 = vmatpush.msra.mxu0 0.0
    %768 = vmatpush.msra.mxu0 0.0
    %769 = vmatpush.msra.mxu0 0.0
    %770 = vmatpush.msra.mxu0 0.0
    %771 = vmatpush.msra.mxu0 0.0
    %772 = vmatpush.msra.mxu0 0.0
    %773 = vmatpush.msra.mxu0 0.0
    %774 = vmatpush.msra.mxu0 0.0
    %775 = vmatpush.msra.mxu0 %v142
    %776 = vmatpush.msra.mxu0 %v141
    %777 = vmatpush.msra.mxu0 %v140
    %778 = vmatpush.msra.mxu0 %v139
    %779 = vmatmul.f32.gmra.mxu0 %v741
    %v780 = vpop.f32.mrf.mxu0
    %v781 = vadd.f32 0.0, %v780
    %782 = vdwg.mxu0
    %s783 = scalar_lea.vmem [#allocation5], 10
    %v784 = vld [vmem:[%s783] sm:$0x3]
    %v785 = vadd.f32 %v784, %v761
    %v786 = vxor.u32 %v785, 2147483648
    %v787 = vmul.f32 %v786, 1.442695
    %v788 = vpow.pop %v787
    %v789 = vadd.f32 %v788, 1.0
    %v790 = vrcp.pop %v789
    %v791 = vmul.f32 %v789, %v790
    %v792 = vsub.f32 1.0, %v791
    %v793 = vmul.f32 %v790, %v792
    %v794 = vadd.f32 %v790, %v793
    %vm795 = vweird.f32 %v789
    %vm796 = vweird.f32 %v790
    %vm797 = vmor %vm795, %vm796
    %v798 = vsel %vm797, %v790, %v794
    %v799 = vand.u32 2147483647, %v789
    %vm800 = vcmp.eq.f32.partialorder %v799, 8.507059e+37
    %v801 = vand.u32 %v789, 2147483648
    %v802 = vor.u32 1.1754944e-38, %v801
    %v803 = vsel %vm800, %v802, %v798
    %v804 = vmul.f32 1.0, %v803
    %s805 = scalar_lea.vmem [#allocation8], 10
    %v806 = vld [vmem:[%s805] sm:$0x3]
    %v807 = vadd.f32 %v806, %v781
    %v808 = vxor.u32 %v807, 2147483648
    %v809 = vmul.f32 %v808, 1.442695
    %v810 = vpow.pop %v809
    %v811 = vadd.f32 %v810, 1.0
    %v812 = vrcp.pop %v811
    %v813 = vmul.f32 %v811, %v812
    %v814 = vsub.f32 1.0, %v813
    %v815 = vmul.f32 %v812, %v814
    %v816 = vadd.f32 %v812, %v815
    %vm817 = vweird.f32 %v811
    %vm818 = vweird.f32 %v812
    %vm819 = vmor %vm817, %vm818
    %v820 = vsel %vm819, %v812, %v816
    %v821 = vand.u32 2147483647, %v811
    %vm822 = vcmp.eq.f32.partialorder %v821, 8.507059e+37
    %v823 = vand.u32 %v811, 2147483648
    %v824 = vor.u32 1.1754944e-38, %v823
    %v825 = vsel %vm822, %v824, %v820
    %v826 = vmul.f32 1.0, %v825
    %s827 = scalar_lea.vmem [#allocation10], 10
    %v828 = vld [vmem:[%s827] sm:$0x3]
    %829 = vmatpush.msra.mxu0 0.0
    %830 = vmatpush.msra.mxu0 0.0
    %831 = vmatpush.msra.mxu0 0.0
    %832 = vmatpush.msra.mxu0 0.0
    %833 = vmatpush.msra.mxu0 0.0
    %834 = vmatpush.msra.mxu0 0.0
    %835 = vmatpush.msra.mxu0 0.0
    %836 = vmatpush.msra.mxu0 0.0
    %837 = vmatpush.msra.mxu0 0.0
    %838 = vmatpush.msra.mxu0 0.0
    %839 = vmatpush.msra.mxu0 0.0
    %840 = vmatpush.msra.mxu0 0.0
    %841 = vmatpush.msra.mxu0 %v146
    %842 = vmatpush.msra.mxu0 %v145
    %843 = vmatpush.msra.mxu0 %v144
    %844 = vmatpush.msra.mxu0 %v143
    %845 = vmatmul.f32.gmra.mxu0 %v741
    %v846 = vpop.f32.mrf.mxu0
    %v847 = vadd.f32 %v149, %v846
    %848 = vdwg.mxu0
    %v849 = vmul.f32 %v804, %v847
    %v850 = vadd.f32 %v828, %v849
    %v851 = vtanh.pop %v850
    %v852 = vsub.f32 1.0, %v826
    %v853 = vmul.f32 %v852, %v851
    %v854 = vmul.f32 %v826, %v737
    %v855 = vadd.f32 %v853, %v854
    %s856 = scalar_lea.vmem [#allocation3], 10
    %857 = vst.msk [vmem:[%s856] sm:$0x3] %vm266, %v855
    %v859 = vsel %vm152, %v855, 0
    %861 = vmatpush.msra.mxu0 0.0
    %862 = vmatpush.msra.mxu0 0.0
    %863 = vmatpush.msra.mxu0 0.0
    %864 = vmatpush.msra.mxu0 0.0
    %865 = vmatpush.msra.mxu0 0.0
    %866 = vmatpush.msra.mxu0 0.0
    %867 = vmatpush.msra.mxu0 0.0
    %868 = vmatpush.msra.mxu0 0.0
    %869 = vmatpush.msra.mxu0 0.0
    %870 = vmatpush.msra.mxu0 0.0
    %871 = vmatpush.msra.mxu0 0.0
    %872 = vmatpush.msra.mxu0 0.0
    %873 = vmatpush.msra.mxu0 %v138
    %874 = vmatpush.msra.mxu0 %v137
    %875 = vmatpush.msra.mxu0 %v136
    %876 = vmatpush.msra.mxu0 %v135
    %877 = vmatmul.f32.gmra.mxu0 %v859
    %v878 = vpop.f32.mrf.mxu0
    %v879 = vadd.f32 0.0, %v878
    %880 = vdwg.mxu0
    %881 = vmatpush.msra.mxu0 0.0
    %882 = vmatpush.msra.mxu0 0.0
    %883 = vmatpush.msra.mxu0 0.0
    %884 = vmatpush.msra.mxu0 0.0
    %885 = vmatpush.msra.mxu0 0.0
    %886 = vmatpush.msra.mxu0 0.0
    %887 = vmatpush.msra.mxu0 0.0
    %888 = vmatpush.msra.mxu0 0.0
    %889 = vmatpush.msra.mxu0 0.0
    %890 = vmatpush.msra.mxu0 0.0
    %891 = vmatpush.msra.mxu0 0.0
    %892 = vmatpush.msra.mxu0 0.0
    %893 = vmatpush.msra.mxu0 %v142
    %894 = vmatpush.msra.mxu0 %v141
    %895 = vmatpush.msra.mxu0 %v140
    %896 = vmatpush.msra.mxu0 %v139
    %897 = vmatmul.f32.gmra.mxu0 %v859
    %v898 = vpop.f32.mrf.mxu0
    %v899 = vadd.f32 0.0, %v898
    %900 = vdwg.mxu0
    %s901 = scalar_lea.vmem [#allocation5], 12
    %v902 = vld [vmem:[%s901] sm:$0x3]
    %v903 = vadd.f32 %v902, %v879
    %v904 = vxor.u32 %v903, 2147483648
    %v905 = vmul.f32 %v904, 1.442695
    %v906 = vpow.pop %v905
    %v907 = vadd.f32 %v906, 1.0
    %v908 = vrcp.pop %v907
    %v909 = vmul.f32 %v907, %v908
    %v910 = vsub.f32 1.0, %v909
    %v911 = vmul.f32 %v908, %v910
    %v912 = vadd.f32 %v908, %v911
    %vm913 = vweird.f32 %v907
    %vm914 = vweird.f32 %v908
    %vm915 = vmor %vm913, %vm914
    %v916 = vsel %vm915, %v908, %v912
    %v917 = vand.u32 2147483647, %v907
    %vm918 = vcmp.eq.f32.partialorder %v917, 8.507059e+37
    %v919 = vand.u32 %v907, 2147483648
    %v920 = vor.u32 1.1754944e-38, %v919
    %v921 = vsel %vm918, %v920, %v916
    %v922 = vmul.f32 1.0, %v921
    %s923 = scalar_lea.vmem [#allocation8], 12
    %v924 = vld [vmem:[%s923] sm:$0x3]
    %v925 = vadd.f32 %v924, %v899
    %v926 = vxor.u32 %v925, 2147483648
    %v927 = vmul.f32 %v926, 1.442695
    %v928 = vpow.pop %v927
    %v929 = vadd.f32 %v928, 1.0
    %v930 = vrcp.pop %v929
    %v931 = vmul.f32 %v929, %v930
    %v932 = vsub.f32 1.0, %v931
    %v933 = vmul.f32 %v930, %v932
    %v934 = vadd.f32 %v930, %v933
    %vm935 = vweird.f32 %v929
    %vm936 = vweird.f32 %v930
    %vm937 = vmor %vm935, %vm936
    %v938 = vsel %vm937, %v930, %v934
    %v939 = vand.u32 2147483647, %v929
    %vm940 = vcmp.eq.f32.partialorder %v939, 8.507059e+37
    %v941 = vand.u32 %v929, 2147483648
    %v942 = vor.u32 1.1754944e-38, %v941
    %v943 = vsel %vm940, %v942, %v938
    %v944 = vmul.f32 1.0, %v943
    %s945 = scalar_lea.vmem [#allocation10], 12
    %v946 = vld [vmem:[%s945] sm:$0x3]
    %947 = vmatpush.msra.mxu0 0.0
    %948 = vmatpush.msra.mxu0 0.0
    %949 = vmatpush.msra.mxu0 0.0
    %950 = vmatpush.msra.mxu0 0.0
    %951 = vmatpush.msra.mxu0 0.0
    %952 = vmatpush.msra.mxu0 0.0
    %953 = vmatpush.msra.mxu0 0.0
    %954 = vmatpush.msra.mxu0 0.0
    %955 = vmatpush.msra.mxu0 0.0
    %956 = vmatpush.msra.mxu0 0.0
    %957 = vmatpush.msra.mxu0 0.0
    %958 = vmatpush.msra.mxu0 0.0
    %959 = vmatpush.msra.mxu0 %v146
    %960 = vmatpush.msra.mxu0 %v145
    %961 = vmatpush.msra.mxu0 %v144
    %962 = vmatpush.msra.mxu0 %v143
    %963 = vmatmul.f32.gmra.mxu0 %v859
    %v964 = vpop.f32.mrf.mxu0
    %v965 = vadd.f32 %v149, %v964
    %966 = vdwg.mxu0
    %v967 = vmul.f32 %v922, %v965
    %v968 = vadd.f32 %v946, %v967
    %v969 = vtanh.pop %v968
    %v970 = vsub.f32 1.0, %v944
    %v971 = vmul.f32 %v970, %v969
    %v972 = vmul.f32 %v944, %v855
    %v973 = vadd.f32 %v971, %v972
    %s974 = scalar_lea.vmem [#allocation3], 12
    %975 = vst.msk [vmem:[%s974] sm:$0x3] %vm266, %v973
    %v977 = vsel %vm152, %v973, 0
    %979 = vmatpush.msra.mxu0 0.0
    %980 = vmatpush.msra.mxu0 0.0
    %981 = vmatpush.msra.mxu0 0.0
    %982 = vmatpush.msra.mxu0 0.0
    %983 = vmatpush.msra.mxu0 0.0
    %984 = vmatpush.msra.mxu0 0.0
    %985 = vmatpush.msra.mxu0 0.0
    %986 = vmatpush.msra.mxu0 0.0
    %987 = vmatpush.msra.mxu0 0.0
    %988 = vmatpush.msra.mxu0 0.0
    %989 = vmatpush.msra.mxu0 0.0
    %990 = vmatpush.msra.mxu0 0.0
    %991 = vmatpush.msra.mxu0 %v138
    %992 = vmatpush.msra.mxu0 %v137
    %993 = vmatpush.msra.mxu0 %v136
    %994 = vmatpush.msra.mxu0 %v135
    %995 = vmatmul.f32.gmra.mxu0 %v977
    %v996 = vpop.f32.mrf.mxu0
    %v997 = vadd.f32 0.0, %v996
    %998 = vdwg.mxu0
    %999 = vmatpush.msra.mxu0 0.0
    %1000 = vmatpush.msra.mxu0 0.0
    %1001 = vmatpush.msra.mxu0 0.0
    %1002 = vmatpush.msra.mxu0 0.0
    %1003 = vmatpush.msra.mxu0 0.0
    %1004 = vmatpush.msra.mxu0 0.0
    %1005 = vmatpush.msra.mxu0 0.0
    %1006 = vmatpush.msra.mxu0 0.0
    %1007 = vmatpush.msra.mxu0 0.0
    %1008 = vmatpush.msra.mxu0 0.0
    %1009 = vmatpush.msra.mxu0 0.0
    %1010 = vmatpush.msra.mxu0 0.0
    %1011 = vmatpush.msra.mxu0 %v142
    %1012 = vmatpush.msra.mxu0 %v141
    %1013 = vmatpush.msra.mxu0 %v140
    %1014 = vmatpush.msra.mxu0 %v139
    %1015 = vmatmul.f32.gmra.mxu0 %v977
    %v1016 = vpop.f32.mrf.mxu0
    %v1017 = vadd.f32 0.0, %v1016
    %1018 = vdwg.mxu0
    %s1019 = scalar_lea.vmem [#allocation5], 14
    %v1020 = vld [vmem:[%s1019] sm:$0x3]
    %v1021 = vadd.f32 %v1020, %v997
    %v1022 = vxor.u32 %v1021, 2147483648
    %v1023 = vmul.f32 %v1022, 1.442695
    %v1024 = vpow.pop %v1023
    %v1025 = vadd.f32 %v1024, 1.0
    %v1026 = vrcp.pop %v1025
    %v1027 = vmul.f32 %v1025, %v1026
    %v1028 = vsub.f32 1.0, %v1027
    %v1029 = vmul.f32 %v1026, %v1028
    %v1030 = vadd.f32 %v1026, %v1029
    %vm1031 = vweird.f32 %v1025
    %vm1032 = vweird.f32 %v1026
    %vm1033 = vmor %vm1031, %vm1032
    %v1034 = vsel %vm1033, %v1026, %v1030
    %v1035 = vand.u32 2147483647, %v1025
    %vm1036 = vcmp.eq.f32.partialorder %v1035, 8.507059e+37
    %v1037 = vand.u32 %v1025, 2147483648
    %v1038 = vor.u32 1.1754944e-38, %v1037
    %v1039 = vsel %vm1036, %v1038, %v1034
    %v1040 = vmul.f32 1.0, %v1039
    %s1041 = scalar_lea.vmem [#allocation8], 14
    %v1042 = vld [vmem:[%s1041] sm:$0x3]
    %v1043 = vadd.f32 %v1042, %v1017
    %v1044 = vxor.u32 %v1043, 2147483648
    %v1045 = vmul.f32 %v1044, 1.442695
    %v1046 = vpow.pop %v1045
    %v1047 = vadd.f32 %v1046, 1.0
    %v1048 = vrcp.pop %v1047
    %v1049 = vmul.f32 %v1047, %v1048
    %v1050 = vsub.f32 1.0, %v1049
    %v1051 = vmul.f32 %v1048, %v1050
    %v1052 = vadd.f32 %v1048, %v1051
    %vm1053 = vweird.f32 %v1047
    %vm1054 = vweird.f32 %v1048
    %vm1055 = vmor %vm1053, %vm1054
    %v1056 = vsel %vm1055, %v1048, %v1052
    %v1057 = vand.u32 2147483647, %v1047
    %vm1058 = vcmp.eq.f32.partialorder %v1057, 8.507059e+37
    %v1059 = vand.u32 %v1047, 2147483648
    %v1060 = vor.u32 1.1754944e-38, %v1059
    %v1061 = vsel %vm1058, %v1060, %v1056
    %v1062 = vmul.f32 1.0, %v1061
    %s1063 = scalar_lea.vmem [#allocation10], 14
    %v1064 = vld [vmem:[%s1063] sm:$0x3]
    %1065 = vmatpush.msra.mxu0 0.0
    %1066 = vmatpush.msra.mxu0 0.0
    %1067 = vmatpush.msra.mxu0 0.0
    %1068 = vmatpush.msra.mxu0 0.0
    %1069 = vmatpush.msra.mxu0 0.0
    %1070 = vmatpush.msra.mxu0 0.0
    %1071 = vmatpush.msra.mxu0 0.0
    %1072 = vmatpush.msra.mxu0 0.0
    %1073 = vmatpush.msra.mxu0 0.0
    %1074 = vmatpush.msra.mxu0 0.0
    %1075 = vmatpush.msra.mxu0 0.0
    %1076 = vmatpush.msra.mxu0 0.0
    %1077 = vmatpush.msra.mxu0 %v146
    %1078 = vmatpush.msra.mxu0 %v145
    %1079 = vmatpush.msra.mxu0 %v144
    %1080 = vmatpush.msra.mxu0 %v143
    %1081 = vmatmul.f32.gmra.mxu0 %v977
    %v1082 = vpop.f32.mrf.mxu0
    %v1083 = vadd.f32 %v149, %v1082
    %1084 = vdwg.mxu0
    %v1085 = vmul.f32 %v1040, %v1083
    %v1086 = vadd.f32 %v1064, %v1085
    %v1087 = vtanh.pop %v1086
    %v1088 = vsub.f32 1.0, %v1062
    %v1089 = vmul.f32 %v1088, %v1087
    %v1090 = vmul.f32 %v1062, %v973
    %v1091 = vadd.f32 %v1089, %v1090
    %s1092 = scalar_lea.vmem [#allocation3], 14
    %1093 = vst.msk [vmem:[%s1092] sm:$0x3] %vm266, %v1091
    %1094 = vst.msk [vmem:[#allocation2] sm:$0x3] %vm266, %v1091
    %v1095 = vld [vmem:[%s7] sm:$0x1]
    %v1096 = vld [vmem:[#allocation3] sm:$0x3]
    %v1097 = vld [vmem:[#allocation3 + $0x2] sm:$0x3]
    %v1098 = vld [vmem:[#allocation3 + $0x4] sm:$0x3]
    %v1099 = vld [vmem:[#allocation3 + $0x6] sm:$0x3]
    %v1100 = vld [vmem:[#allocation3 + $0x8] sm:$0x3]
    %v1101 = vld [vmem:[#allocation3 + $0xa] sm:$0x3]
    %v1102 = vld [vmem:[#allocation3 + $0xc] sm:$0x3]
    %v1103 = vld [vmem:[#allocation3 + $0xe] sm:$0x3]
    %v1105 = vperm.slane %v1095, 0
    %v1107 = vmul.f32 %v1096, %v1105
    %v1108 = vmul.f32 %v1097, %v1105
    %v1109 = vmul.f32 %v1098, %v1105
    %v1110 = vmul.f32 %v1099, %v1105
    %v1111 = vmul.f32 %v1100, %v1105
    %v1112 = vmul.f32 %v1101, %v1105
    %v1113 = vmul.f32 %v1102, %v1105
    %v1114 = vmul.f32 %v1103, %v1105
    %v1115 = vsel %vm266, %v1107, 0.0
    %1116 = vadd.xlane.f32.xlu0 %v1115
    %v1117 = vpop.xlane.xlu0 %1116
    %v1118 = vsel %vm266, %v1108, 0.0
    %1119 = vadd.xlane.f32.xlu0 %v1118
    %v1120 = vpop.xlane.xlu0 %1119
    %v1121 = vsel %vm266, %v1109, 0.0
    %1122 = vadd.xlane.f32.xlu0 %v1121
    %v1123 = vpop.xlane.xlu0 %1122
    %v1124 = vsel %vm266, %v1110, 0.0
    %1125 = vadd.xlane.f32.xlu0 %v1124
    %v1126 = vpop.xlane.xlu0 %1125
    %v1127 = vsel %vm266, %v1111, 0.0
    %1128 = vadd.xlane.f32.xlu0 %v1127
    %v1129 = vpop.xlane.xlu0 %1128
    %v1130 = vsel %vm266, %v1112, 0.0
    %1131 = vadd.xlane.f32.xlu0 %v1130
    %v1132 = vpop.xlane.xlu0 %1131
    %v1133 = vsel %vm266, %v1113, 0.0
    %1134 = vadd.xlane.f32.xlu0 %v1133
    %v1135 = vpop.xlane.xlu0 %1134
    %v1136 = vsel %vm266, %v1114, 0.0
    %1137 = vadd.xlane.f32.xlu0 %v1136
    %v1138 = vpop.xlane.xlu0 %1137
    %v1147 = vlaneseq
    %v1148 = vand.u32 %v1147, 127
    %v1149 = vperm.slane %v1117, %v1148
    %v1150 = vperm.slane %v1120, %v1148
    %v1151 = vperm.slane %v1123, %v1148
    %v1152 = vperm.slane %v1126, %v1148
    %v1153 = vperm.slane %v1129, %v1148
    %v1154 = vperm.slane %v1132, %v1148
    %v1155 = vperm.slane %v1135, %v1148
    %v1156 = vperm.slane %v1138, %v1148
    %vm1157 = vcmask 1041409
    %v1158 = vsel %vm1157, %v1150, %v1149
    %vm1159 = vcmask 1042434
    %v1160 = vsel %vm1159, %v1151, %v1158
    %vm1161 = vcmask 1043459
    %v1162 = vsel %vm1161, %v1152, %v1160
    %vm1163 = vcmask 1044484
    %v1164 = vsel %vm1163, %v1153, %v1162
    %vm1165 = vcmask 1045509
    %v1166 = vsel %vm1165, %v1154, %v1164
    %vm1167 = vcmask 1046534
    %v1168 = vsel %vm1167, %v1155, %v1166
    %vm1169 = vcmask 1047559
    %v1170 = vsel %vm1169, %v1156, %v1168
    %1172 = vxpose.xlu0.b32.start [1/16] %v1170, 128
    %1173 = vxpose.xlu0.b32.cont [2/16] 0.0, 128
    %1174 = vxpose.xlu0.b32.cont [3/16] 0.0, 128
    %1175 = vxpose.xlu0.b32.cont [4/16] 0.0, 128
    %1176 = vxpose.xlu0.b32.cont [5/16] 0.0, 128
    %1177 = vxpose.xlu0.b32.cont [6/16] 0.0, 128
    %1178 = vxpose.xlu0.b32.cont [7/16] 0.0, 128
    %1179 = vxpose.xlu0.b32.cont [8/16] 0.0, 128
    %1180 = vxpose.xlu0.b32.cont [9/16] 0.0, 128
    %1181 = vxpose.xlu0.b32.cont [10/16] 0.0, 128
    %1182 = vxpose.xlu0.b32.cont [11/16] 0.0, 128
    %1183 = vxpose.xlu0.b32.cont [12/16] 0.0, 128
    %1184 = vxpose.xlu0.b32.cont [13/16] 0.0, 128
    %1185 = vxpose.xlu0.b32.cont [14/16] 0.0, 128
    %1186 = vxpose.xlu0.b32.cont [15/16] 0.0, 128
    %1187 = vxpose.xlu0.b32.end [16/16] 0.0, 128
    %v1188 = vpop.trf.xlu0
    %v1189 = vpop.trf.xlu0
    %v1190 = vpop.trf.xlu0
    %v1191 = vpop.trf.xlu0
    %v1192 = vpop.trf.xlu0
    %v1193 = vpop.trf.xlu0
    %v1194 = vpop.trf.xlu0
    %v1195 = vpop.trf.xlu0
    %v1196 = vpop.trf.xlu0
    %v1197 = vpop.trf.xlu0
    %v1198 = vpop.trf.xlu0
    %v1199 = vpop.trf.xlu0
    %v1200 = vpop.trf.xlu0
    %v1201 = vpop.trf.xlu0
    %v1202 = vpop.trf.xlu0
    %v1203 = vpop.trf.xlu0
    %v1204 = vld [vmem:[#allocation4] sm:$0x1]
    %s1205 = vtos %v1204
    %v1206 = vstv %s1205
    %v1207 = vadd.f32 %v1188, %v1206
    %vm1208 = vcmask 58368
    %1209 = vst.msk [vmem:[#allocation16] sm:$0x3] %vm1208, %v1207
    // Predicated region
    $region66: #{tpu_custom_call.1} parent=1 // pred_check
      _
    $region67: #{tpu_custom_call.1} parent=1 // pred_check_branch
      %1211 = sbr.rel (0) target = $region69
    $region68: #{tpu_custom_call.1} parent=1 // pred_region
      %1213 = vsyncadd [#allocation7], 0
      %s1215 = sshll.u32 [#allocation16], 4
      %s1216 = int_to_ptr.vmem [resolvable:$true] %s1215
      %s1217 = sshll.u32 %s9, 4
      %s1218 = int_to_ptr.hbm [resolvable:$true] %s1217
      %1220 = dma.vmem_to_hbm [thread:$0]  %s1216, 32, %s1218, [#allocation7]
    $region69: #{tpu_custom_call.1} parent=1 // pred_fallthru
      _
    // Predicated region
    $region70: #{tpu_custom_call.1} parent=1 // pred_check
      _
    $region71: #{tpu_custom_call.1} parent=1 // pred_check_branch
      %1222 = sbr.rel (0) target = $region73
    $region72: #{tpu_custom_call.1} parent=1 // pred_region
      %1224 = dma.done [#allocation7], 32
    $region73: #{tpu_custom_call.1} parent=1 // pred_fallthru
      _
    %1225 = vsyncpa [#allocation6], 1
    %1226 = vsyncpa [#allocation9], 1
    %1227 = vsyncpa [#allocation12], 1
    %1228 = vsyncpa [#allocation15], 1
    %1229 = vsyncpa [#allocation7], 1

</llo_original>
